<compile_context>
chip_gen: v7x
topology: tpu7x:2x2x1
jax: 0.10.0
libtpu: 0.0.40
codegen_flags: <defaults>
</compile_context>

<pallas_src>
import math
import numpy as np
import jax
import jax.numpy as jnp
from jax import lax
from jax.experimental import pallas as pl
from jax.experimental.pallas import tpu as pltpu

PAD = 128  # lane padding of every feature dimension


# ----------------------------- math helpers (used in-kernel and in the reference) -------
def _softplus(x):
    # numerically stable softplus, matches F.softplus semantics
    return jnp.maximum(x, 0.0) + jnp.log(1.0 + jnp.exp(-jnp.abs(x)))


def _sigmoid(x):
    return 1.0 / (1.0 + jnp.exp(-x))


# ----------------------------- Pallas kernel --------------------------------------------
def make_cnp_kernel(n_enc, n_dec, is_binary=True):
    """Fused CNP forward kernel; layer counts / binary flag closed over statically."""

    def kernel(ctx_ref, tgtx_ref, tgty_ref, avg_ref,
               enc_w_ref, enc_b_ref, dec_w_ref, dec_b_ref, out_ref):
        cdt = enc_w_ref.dtype            # matmul dtype (bf16 on v6e/v7x); accumulation f32

        # ---------------- encoder MLP over this block's context rows --------------------
        h = ctx_ref[...]                                             # (G*Nc, PAD) cdt
        for i in range(n_enc):                                       # static unrolled
            h = jnp.dot(h, enc_w_ref[i],
                        preferred_element_type=jnp.float32) + enc_b_ref[i]   # f32
            if i < n_enc - 1:
                h = jnp.maximum(h, 0.0).astype(cdt)

        # ---------------- per-group context mean fused with broadcast (MXU) -------------
        # avg_ref is the per-GROUP block-diagonal matrix S[g*Nt+t, g*Nc+c] = 1/Nc, so
        # S @ h == broadcast(mean over each batch's context points).  It is O(G^2) (not
        # O(B^2)) and is resident across all grid steps (constant index_map).
        rep = jnp.dot(avg_ref[...], h.astype(cdt),
                      preferred_element_type=jnp.float32)            # (G*Nt, PAD) f32

        # ---------------- decoder MLP over this block's target rows ---------------------
        # target_x was pre-placed at lanes [rep_dim, rep_dim+x_dim); rep is zero there,
        # so the add reproduces torch.cat((representation, target_x), -1) exactly.
        h = (rep + tgtx_ref[...]).astype(cdt)
        for i in range(n_dec):
            h = jnp.dot(h, dec_w_ref[i],
                        preferred_element_type=jnp.float32) + dec_b_ref[i]
            if i < n_dec - 1:
                h = jnp.maximum(h, 0.0).astype(cdt)
        # h is f32: lane 0 = mu, lane 1 = sigma, lanes >= 2 are exactly 0 (zero padding).

        # ---------------- epilogue (f32, no lane rolls) ----------------------------------
        lane = lax.broadcasted_iota(jnp.int32, h.shape, 1)
        mu = jnp.sum(jnp.where(lane == 0, h, 0.0), axis=-1, keepdims=True)   # (rows, 1)
        sg = jnp.sum(h, axis=-1, keepdims=True) - mu                         # lane-1 value
        ty = tgty_ref[...]                                                   # (rows, 1) f32

        if is_binary:
            s = 0.1 + 0.9 * _softplus(sg)
            # y = sqrt(1 + 3/pi^2 * s^2) >= 1, so the reference clamp(y, 1e-4) is inert and
            # 1/y is a single EUP rsqrt (replaces sqrt + two divides).
            inv_y = lax.rsqrt(1.0 + (3.0 / (math.pi ** 2)) * (s * s))
            expectation = _sigmoid(mu * inv_y)
            var = expectation * (1.0 - expectation) * (1.0 - inv_y)
            mu, sg = expectation, var

        sg = _softplus(sg) + 1e-6
        # Independent(Normal(mu, sigma), 1).log_prob(target_y): the event dim has size 1,
        # so the event-axis sum is just the per-element Normal log pdf.
        z = (ty - mu) / sg
        logp = -0.5 * (z * z) - jnp.log(sg) - 0.5 * math.log(2.0 * math.pi)

        # ---------------- pack (mu, sigma, logp) into lanes 0/1/2 of one dense slab -----
        out_ref[...] = (jnp.where(lane == 0, mu, 0.0)
                        + jnp.where(lane == 1, sg, 0.0)
                        + jnp.where(lane == 2, logp, 0.0))            # single dense store

    return kernel


# ----------------------------- parameter setup / padding glue ---------------------------
def init_linear(key, fan_in, fan_out):
    """Deterministic PyTorch-Linear-style init (uniform +/- 1/sqrt(fan_in))."""
    kw, kb = jax.random.split(key)
    bound = 1.0 / math.sqrt(fan_in)
    w = jax.random.uniform(kw, (fan_in, fan_out), jnp.float32, -bound, bound)
    b = jax.random.uniform(kb, (fan_out,), jnp.float32, -bound, bound)
    return w, b


def init_mlp(key, sizes):
    keys = jax.random.split(key, len(sizes) - 1)
    return [init_linear(keys[i], sizes[i], sizes[i + 1]) for i in range(len(sizes) - 1)]


def _pad_w(w, dtype):
    # zero padding keeps padded lanes identically zero through every layer
    return jnp.zeros((PAD, PAD), dtype).at[:w.shape[0], :w.shape[1]].set(w.astype(dtype))


def _pad_b(b):
    return jnp.zeros((1, PAD), jnp.float32).at[0, :b.shape[0]].set(b)


# ----------------------------- forward wrapper -------------------------------------------
def cnp_forward(enc_params, dec_params, context_x, context_y, target_x, target_y,
                is_binary=True, batch_block=None, matmul_dtype=jnp.bfloat16):
    B, Nc, xdim = context_x.shape
    _, Nt, _ = target_x.shape
    ydim = context_y.shape[-1]
    rep_dim = enc_params[-1][0].shape[1]   # size of the representation r
    assert ydim == 1, "lane packing assumes y_dim == 1 (as in the module docstring)"
    assert xdim + ydim <= PAD and rep_dim + xdim <= PAD

    # ---- batch-group size G: each grid step processes G batches (M = G*Nt rows) --------
    if batch_block is None:
        g = max(1, min(B, 512 // max(Nc, Nt, 1)))   # aim for ~512-row blocks for the MXU
        while B % g:
            g -= 1
        batch_block = g
    G = batch_block
    assert B % G == 0
    num_blocks = B // G
    rows_c, rows_t = G * Nc, G * Nt
    assert num_blocks == 1 or (rows_c % 8 == 0 and rows_t % 8 == 0), \
        "per-block row counts must be sublane (8) aligned when gridded"

    cdt = matmul_dtype

    # encoder input: concat(context_x, context_y), flattened, lane-padded, matmul dtype
    ctx = jnp.concatenate([context_x, context_y], axis=-1).reshape(B * Nc, xdim + ydim)
    ctx_pad = jnp.zeros((B * Nc, PAD), cdt).at[:, :xdim + ydim].set(ctx.astype(cdt))

    # target_x placed at lanes [rep_dim, rep_dim+xdim): kernel "concats" by addition
    tx = target_x.reshape(B * Nt, xdim)
    tx_pad = jnp.zeros((B * Nt, PAD), cdt).at[:, rep_dim:rep_dim + xdim].set(tx.astype(cdt))

    # target_y stays a narrow f32 column (consumed only by the f32 epilogue)
    ty_col = target_y.reshape(B * Nt, ydim).astype(jnp.float32)

    # per-GROUP block-diagonal averaging matrix: S[g*Nt+t, g*Nc+c] = 1/Nc  (O(G^2), resident)
    avg = jnp.kron(jnp.eye(G, dtype=jnp.float32),
                   jnp.ones((Nt, Nc), jnp.float32) / Nc).astype(cdt)   # (G*Nt, G*Nc)

    # stacked, zero-padded parameters (weights in matmul dtype, biases in f32)
    enc_w = jnp.stack([_pad_w(w, cdt) for w, _ in enc_params])     # (n_enc, PAD, PAD)
    enc_b = jnp.stack([_pad_b(b) for _, b in enc_params])          # (n_enc, 1, PAD)
    dec_w = jnp.stack([_pad_w(w, cdt) for w, _ in dec_params])     # (n_dec, PAD, PAD)
    dec_b = jnp.stack([_pad_b(b) for _, b in dec_params])          # (n_dec, 1, PAD)

    kernel = make_cnp_kernel(len(enc_params), len(dec_params), is_binary)

    grid_spec = pltpu.PrefetchScalarGridSpec(
        num_scalar_prefetch=0,
        grid=(num_blocks,),
        in_specs=[
            pl.BlockSpec((rows_c, PAD), lambda g: (g, 0)),        # context rows (pipelined)
            pl.BlockSpec((rows_t, PAD), lambda g: (g, 0)),        # target_x rows (pipelined)
            pl.BlockSpec((rows_t, ydim), lambda g: (g, 0)),       # target_y column
            pl.BlockSpec((rows_t, rows_c), lambda g: (0, 0)),     # averaging const (resident)
            pl.BlockSpec(enc_w.shape, lambda g: (0, 0, 0)),       # weights/biases: DMA'd
            pl.BlockSpec(enc_b.shape, lambda g: (0, 0, 0)),       #   once, resident across
            pl.BlockSpec(dec_w.shape, lambda g: (0, 0, 0)),       #   all grid steps
            pl.BlockSpec(dec_b.shape, lambda g: (0, 0, 0)),
        ],
        out_specs=pl.BlockSpec((rows_t, PAD), lambda g: (g, 0)),
    )

    packed = pl.pallas_call(
        kernel,
        out_shape=jax.ShapeDtypeStruct((B * Nt, PAD), jnp.float32),
        grid_spec=grid_spec,
        compiler_params=pltpu.CompilerParams(
            dimension_semantics=("parallel",),      # row grid -> both TCs usable on v7x
            vmem_limit_bytes=32 * 1024 * 1024,      # raise v5e's 16 MiB scoped default
        ),
    )(ctx_pad, tx_pad, ty_col, avg, enc_w, enc_b, dec_w, dec_b)

    mu = packed[:, 0:1].reshape(B, Nt, 1)
    sigma = packed[:, 1:2].reshape(B, Nt, 1)
    log_p = packed[:, 2].reshape(B, Nt)
    # TODO(synk): the torch.distributions.Independent(Normal) object itself is not
    # materialized; only log_prob / mu / sigma (what the module returns) are computed.
    return log_p, mu, sigma


# ----------------------------- pure-JAX reference (for verification) --------------------
def cnp_reference(enc_params, dec_params, context_x, context_y, target_x, target_y,
                  is_binary=True, matmul_dtype=jnp.float32):
    def mm(a, w):
        return jnp.dot(a.astype(matmul_dtype), w.astype(matmul_dtype),
                       preferred_element_type=jnp.float32)

    enc_in = jnp.concatenate([context_x, context_y], axis=-1)
    B, Nc, _ = enc_in.shape
    h = enc_in.reshape(B * Nc, -1).astype(jnp.float32)
    for i, (w, b) in enumerate(enc_params):
        h = mm(h, w) + b
        if i < len(enc_params) - 1:
            h = jnp.maximum(h, 0.0)
    rep = h.reshape(B, Nc, -1)
    rep = jnp.mean(rep.astype(matmul_dtype).astype(jnp.float32), axis=1)

    _, Nt, _ = target_x.shape
    rep_r = jnp.broadcast_to(rep[:, None, :], (B, Nt, rep.shape[-1]))
    h = jnp.concatenate([rep_r, target_x.astype(jnp.float32)], axis=-1).reshape(B * Nt, -1)
    for i, (w, b) in enumerate(dec_params):
        h = mm(h, w) + b
        if i < len(dec_params) - 1:
            h = jnp.maximum(h, 0.0)
    h = h.reshape(B, Nt, -1)
    mu, sigma = jnp.split(h, 2, axis=-1)

    if is_binary:
        s = 0.1 + 0.9 * _softplus(sigma)
        y = jnp.sqrt(1.0 + 3.0 / (math.pi ** 2) * s * s)
        y = jnp.maximum(y, 1e-4)
        expectation = _sigmoid(mu / y)
        var = expectation * (1.0 - expectation) * (1.0 - 1.0 / y)
        mu, sigma = expectation, var
    sigma = _softplus(sigma) + 1e-6

    log_p = jnp.sum(-0.5 * jnp.square((target_y - mu) / sigma)
                    - jnp.log(sigma) - 0.5 * math.log(2.0 * math.pi), axis=-1)
    return log_p, mu, sigma


# ----------------------------- main -------------------------------------------------------
if __name__ == "__main__":
    key = jax.random.PRNGKey(0)
    k_enc, k_dec, k_cx, k_cy, k_tx, k_ty = jax.random.split(key, 6)

    # shapes consistent with the module: x_dim = y_dim = 1
    B, Nc, Nt = 4, 8, 8
    encoder_sizes = [2, 32, 32, 32]      # input = x_dim + y_dim, representation r = 32
    decoder_sizes = [33, 32, 32, 2]      # input = r + x_dim, output = 2 * y_dim

    enc_params = init_mlp(k_enc, encoder_sizes)
    dec_params = init_mlp(k_dec, decoder_sizes)

    context_x = jax.random.normal(k_cx, (B, Nc, 1), jnp.float32)
    context_y = jax.random.normal(k_cy, (B, Nc, 1), jnp.float32)
    target_x = jax.random.normal(k_tx, (B, Nt, 1), jnp.float32)
    target_y = jax.random.normal(k_ty, (B, Nt, 1), jnp.float32)

    # batch_block=2 -> grid of 2 steps: exercises the row grid, the resident
    # weight/averaging BlockSpecs, and the parallel dimension semantics.
    log_p, mu, sigma = cnp_forward(enc_params, dec_params,
                                   context_x, context_y, target_x, target_y,
                                   is_binary=True, batch_block=2,
                                   matmul_dtype=jnp.bfloat16)
    jax.block_until_ready((log_p, mu, sigma))

    assert log_p.shape == (B, Nt)
    assert mu.shape == (B, Nt, 1)
    assert sigma.shape == (B, Nt, 1)

    # (1) tight check against a pure-JAX reference using the same bf16 matmul inputs
    t_logp, t_mu, t_sigma = cnp_reference(enc_params, dec_params, context_x, context_y,
                                          target_x, target_y, is_binary=True,
                                          matmul_dtype=jnp.bfloat16)
    np.testing.assert_allclose(np.asarray(mu), np.asarray(t_mu), rtol=1e-2, atol=5e-3)
    np.testing.assert_allclose(np.asarray(sigma), np.asarray(t_sigma), rtol=1e-2, atol=5e-3)
    np.testing.assert_allclose(np.asarray(log_p), np.asarray(t_logp), rtol=2e-2, atol=2e-2)

    # (2) loose semantic check against the exact f32 reference (kernel matmuls are bf16)
    f_logp, f_mu, f_sigma = cnp_reference(enc_params, dec_params, context_x, context_y,
                                          target_x, target_y, is_binary=True,
                                          matmul_dtype=jnp.float32)
    np.testing.assert_allclose(np.asarray(mu), np.asarray(f_mu), rtol=3e-2, atol=3e-2)
    np.testing.assert_allclose(np.asarray(sigma), np.asarray(f_sigma), rtol=3e-2, atol=3e-2)
    np.testing.assert_allclose(np.asarray(log_p), np.asarray(f_logp), rtol=1e-1, atol=2e-1)

    print("KERNEL_OK")
</pallas_src>

<mosaic_0001>
module attributes {stable_mosaic.version = 11 : i64} {
  func.func @kernel(%arg0: i32, %arg1: memref<16x128xbf16, #tpu.memory_space<vmem>>, %arg2: memref<16x128xbf16, #tpu.memory_space<vmem>>, %arg3: memref<16x1xf32, #tpu.memory_space<vmem>>, %arg4: memref<16x16xbf16, #tpu.memory_space<vmem>>, %arg5: memref<3x128x128xbf16, #tpu.memory_space<vmem>>, %arg6: memref<3x1x128xf32, #tpu.memory_space<vmem>>, %arg7: memref<3x128x128xbf16, #tpu.memory_space<vmem>>, %arg8: memref<3x1x128xf32, #tpu.memory_space<vmem>>, %arg9: memref<16x128xf32, #tpu.memory_space<vmem>>) attributes {dimension_semantics = [#tpu.dimension_semantics<parallel>], iteration_bounds = array<i64: 2>, scalar_prefetch = 0 : i64, scratch_operands = 0 : i64, tpu.core_type = #tpu.core_type<tc>, window_params = [{transform_indices = @transform_0, window_bounds = array<i64: 16, 128>}, {transform_indices = @transform_1, window_bounds = array<i64: 16, 128>}, {transform_indices = @transform_2, window_bounds = array<i64: 16, 1>}, {pipeline_mode = #tpu.pipeline_mode<synchronous>, transform_indices = @transform_3, window_bounds = array<i64: 16, 16>}, {pipeline_mode = #tpu.pipeline_mode<synchronous>, transform_indices = @transform_4, window_bounds = array<i64: 3, 128, 128>}, {pipeline_mode = #tpu.pipeline_mode<synchronous>, transform_indices = @transform_5, window_bounds = array<i64: 3, 1, 128>}, {pipeline_mode = #tpu.pipeline_mode<synchronous>, transform_indices = @transform_6, window_bounds = array<i64: 3, 128, 128>}, {pipeline_mode = #tpu.pipeline_mode<synchronous>, transform_indices = @transform_7, window_bounds = array<i64: 3, 1, 128>}, {transform_indices = @transform_8, window_bounds = array<i64: 16, 128>}]} {
    %c0 = arith.constant 0 : index
    %c0_0 = arith.constant 0 : index
    %0 = vector.load %arg1[%c0, %c0_0] : memref<16x128xbf16, #tpu.memory_space<vmem>>, vector<16x128xbf16>
    %c0_1 = arith.constant 0 : index
    %c0_2 = arith.constant 0 : index
    %c0_3 = arith.constant 0 : index
    %1 = vector.load %arg5[%c0_1, %c0_2, %c0_3] : memref<3x128x128xbf16, #tpu.memory_space<vmem>>, vector<1x128x128xbf16>
    %2 = vector.shape_cast %1 : vector<1x128x128xbf16> to vector<128x128xbf16>
    %cst = arith.constant dense<0.000000e+00> : vector<16x128xf32>
    %3 = tpu.matmul %0, %2, %cst {dimension_numbers = #tpu.dot_dimension_numbers<[1], [0], [0], [1], [0, 0, 1, 1], [], []>} : vector<16x128xbf16>, vector<128x128xbf16>, vector<16x128xf32> -> vector<16x128xf32>
    %c0_4 = arith.constant 0 : index
    %c0_5 = arith.constant 0 : index
    %c0_6 = arith.constant 0 : index
    %4 = vector.load %arg6[%c0_4, %c0_5, %c0_6] : memref<3x1x128xf32, #tpu.memory_space<vmem>>, vector<1x1x128xf32>
    %5 = vector.shape_cast %4 : vector<1x1x128xf32> to vector<1x128xf32>
    %6 = vector.broadcast %5 : vector<1x128xf32> to vector<16x128xf32>
    %7 = arith.addf %3, %6 : vector<16x128xf32>
    %cst_7 = arith.constant 0.000000e+00 : f32
    %8 = vector.broadcast %cst_7 : f32 to vector<16x128xf32>
    %9 = arith.maximumf %7, %8 : vector<16x128xf32>
    %10 = arith.truncf %9 : vector<16x128xf32> to vector<16x128xbf16>
    %c1 = arith.constant 1 : index
    %c0_8 = arith.constant 0 : index
    %c0_9 = arith.constant 0 : index
    %11 = vector.load %arg5[%c1, %c0_8, %c0_9] : memref<3x128x128xbf16, #tpu.memory_space<vmem>>, vector<1x128x128xbf16>
    %12 = vector.shape_cast %11 : vector<1x128x128xbf16> to vector<128x128xbf16>
    %cst_10 = arith.constant dense<0.000000e+00> : vector<16x128xf32>
    %13 = tpu.matmul %10, %12, %cst_10 {dimension_numbers = #tpu.dot_dimension_numbers<[1], [0], [0], [1], [0, 0, 1, 1], [], []>} : vector<16x128xbf16>, vector<128x128xbf16>, vector<16x128xf32> -> vector<16x128xf32>
    %c1_11 = arith.constant 1 : index
    %c0_12 = arith.constant 0 : index
    %c0_13 = arith.constant 0 : index
    %14 = vector.load %arg6[%c1_11, %c0_12, %c0_13] : memref<3x1x128xf32, #tpu.memory_space<vmem>>, vector<1x1x128xf32>
    %15 = vector.shape_cast %14 : vector<1x1x128xf32> to vector<1x128xf32>
    %16 = vector.broadcast %15 : vector<1x128xf32> to vector<16x128xf32>
    %17 = arith.addf %13, %16 : vector<16x128xf32>
    %cst_14 = arith.constant 0.000000e+00 : f32
    %18 = vector.broadcast %cst_14 : f32 to vector<16x128xf32>
    %19 = arith.maximumf %17, %18 : vector<16x128xf32>
    %20 = arith.truncf %19 : vector<16x128xf32> to vector<16x128xbf16>
    %c2 = arith.constant 2 : index
    %c0_15 = arith.constant 0 : index
    %c0_16 = arith.constant 0 : index
    %21 = vector.load %arg5[%c2, %c0_15, %c0_16] : memref<3x128x128xbf16, #tpu.memory_space<vmem>>, vector<1x128x128xbf16>
    %22 = vector.shape_cast %21 : vector<1x128x128xbf16> to vector<128x128xbf16>
    %cst_17 = arith.constant dense<0.000000e+00> : vector<16x128xf32>
    %23 = tpu.matmul %20, %22, %cst_17 {dimension_numbers = #tpu.dot_dimension_numbers<[1], [0], [0], [1], [0, 0, 1, 1], [], []>} : vector<16x128xbf16>, vector<128x128xbf16>, vector<16x128xf32> -> vector<16x128xf32>
    %c2_18 = arith.constant 2 : index
    %c0_19 = arith.constant 0 : index
    %c0_20 = arith.constant 0 : index
    %24 = vector.load %arg6[%c2_18, %c0_19, %c0_20] : memref<3x1x128xf32, #tpu.memory_space<vmem>>, vector<1x1x128xf32>
    %25 = vector.shape_cast %24 : vector<1x1x128xf32> to vector<1x128xf32>
    %26 = vector.broadcast %25 : vector<1x128xf32> to vector<16x128xf32>
    %27 = arith.addf %23, %26 : vector<16x128xf32>
    %c0_21 = arith.constant 0 : index
    %c0_22 = arith.constant 0 : index
    %28 = vector.load %arg4[%c0_21, %c0_22] : memref<16x16xbf16, #tpu.memory_space<vmem>>, vector<16x16xbf16>
    %29 = arith.truncf %27 : vector<16x128xf32> to vector<16x128xbf16>
    %cst_23 = arith.constant dense<0.000000e+00> : vector<16x128xf32>
    %30 = tpu.matmul %28, %29, %cst_23 {dimension_numbers = #tpu.dot_dimension_numbers<[1], [0], [0], [1], [0, 0, 1, 1], [], []>} : vector<16x16xbf16>, vector<16x128xbf16>, vector<16x128xf32> -> vector<16x128xf32>
    %c0_24 = arith.constant 0 : index
    %c0_25 = arith.constant 0 : index
    %31 = vector.load %arg2[%c0_24, %c0_25] : memref<16x128xbf16, #tpu.memory_space<vmem>>, vector<16x128xbf16>
    %32 = arith.extf %31 : vector<16x128xbf16> to vector<16x128xf32>
    %33 = arith.addf %30, %32 : vector<16x128xf32>
    %34 = arith.truncf %33 : vector<16x128xf32> to vector<16x128xbf16>
    %c0_26 = arith.constant 0 : index
    %c0_27 = arith.constant 0 : index
    %c0_28 = arith.constant 0 : index
    %35 = vector.load %arg7[%c0_26, %c0_27, %c0_28] : memref<3x128x128xbf16, #tpu.memory_space<vmem>>, vector<1x128x128xbf16>
    %36 = vector.shape_cast %35 : vector<1x128x128xbf16> to vector<128x128xbf16>
    %cst_29 = arith.constant dense<0.000000e+00> : vector<16x128xf32>
    %37 = tpu.matmul %34, %36, %cst_29 {dimension_numbers = #tpu.dot_dimension_numbers<[1], [0], [0], [1], [0, 0, 1, 1], [], []>} : vector<16x128xbf16>, vector<128x128xbf16>, vector<16x128xf32> -> vector<16x128xf32>
    %c0_30 = arith.constant 0 : index
    %c0_31 = arith.constant 0 : index
    %c0_32 = arith.constant 0 : index
    %38 = vector.load %arg8[%c0_30, %c0_31, %c0_32] : memref<3x1x128xf32, #tpu.memory_space<vmem>>, vector<1x1x128xf32>
    %39 = vector.shape_cast %38 : vector<1x1x128xf32> to vector<1x128xf32>
    %40 = vector.broadcast %39 : vector<1x128xf32> to vector<16x128xf32>
    %41 = arith.addf %37, %40 : vector<16x128xf32>
    %cst_33 = arith.constant 0.000000e+00 : f32
    %42 = vector.broadcast %cst_33 : f32 to vector<16x128xf32>
    %43 = arith.maximumf %41, %42 : vector<16x128xf32>
    %44 = arith.truncf %43 : vector<16x128xf32> to vector<16x128xbf16>
    %c1_34 = arith.constant 1 : index
    %c0_35 = arith.constant 0 : index
    %c0_36 = arith.constant 0 : index
    %45 = vector.load %arg7[%c1_34, %c0_35, %c0_36] : memref<3x128x128xbf16, #tpu.memory_space<vmem>>, vector<1x128x128xbf16>
    %46 = vector.shape_cast %45 : vector<1x128x128xbf16> to vector<128x128xbf16>
    %cst_37 = arith.constant dense<0.000000e+00> : vector<16x128xf32>
    %47 = tpu.matmul %44, %46, %cst_37 {dimension_numbers = #tpu.dot_dimension_numbers<[1], [0], [0], [1], [0, 0, 1, 1], [], []>} : vector<16x128xbf16>, vector<128x128xbf16>, vector<16x128xf32> -> vector<16x128xf32>
    %c1_38 = arith.constant 1 : index
    %c0_39 = arith.constant 0 : index
    %c0_40 = arith.constant 0 : index
    %48 = vector.load %arg8[%c1_38, %c0_39, %c0_40] : memref<3x1x128xf32, #tpu.memory_space<vmem>>, vector<1x1x128xf32>
    %49 = vector.shape_cast %48 : vector<1x1x128xf32> to vector<1x128xf32>
    %50 = vector.broadcast %49 : vector<1x128xf32> to vector<16x128xf32>
    %51 = arith.addf %47, %50 : vector<16x128xf32>
    %cst_41 = arith.constant 0.000000e+00 : f32
    %52 = vector.broadcast %cst_41 : f32 to vector<16x128xf32>
    %53 = arith.maximumf %51, %52 : vector<16x128xf32>
    %54 = arith.truncf %53 : vector<16x128xf32> to vector<16x128xbf16>
    %c2_42 = arith.constant 2 : index
    %c0_43 = arith.constant 0 : index
    %c0_44 = arith.constant 0 : index
    %55 = vector.load %arg7[%c2_42, %c0_43, %c0_44] : memref<3x128x128xbf16, #tpu.memory_space<vmem>>, vector<1x128x128xbf16>
    %56 = vector.shape_cast %55 : vector<1x128x128xbf16> to vector<128x128xbf16>
    %cst_45 = arith.constant dense<0.000000e+00> : vector<16x128xf32>
    %57 = tpu.matmul %54, %56, %cst_45 {dimension_numbers = #tpu.dot_dimension_numbers<[1], [0], [0], [1], [0, 0, 1, 1], [], []>} : vector<16x128xbf16>, vector<128x128xbf16>, vector<16x128xf32> -> vector<16x128xf32>
    %c2_46 = arith.constant 2 : index
    %c0_47 = arith.constant 0 : index
    %c0_48 = arith.constant 0 : index
    %58 = vector.load %arg8[%c2_46, %c0_47, %c0_48] : memref<3x1x128xf32, #tpu.memory_space<vmem>>, vector<1x1x128xf32>
    %59 = vector.shape_cast %58 : vector<1x1x128xf32> to vector<1x128xf32>
    %60 = vector.broadcast %59 : vector<1x128xf32> to vector<16x128xf32>
    %61 = arith.addf %57, %60 : vector<16x128xf32>
    %62 = tpu.iota {dimensions = array<i32: 1>} : vector<16x128xi32>
    %c0_i32 = arith.constant 0 : i32
    %63 = vector.broadcast %c0_i32 : i32 to vector<16x128xi32>
    %64 = arith.cmpi eq, %62, %63 : vector<16x128xi32>
    %cst_49 = arith.constant 0.000000e+00 : f32
    %65 = vector.broadcast %cst_49 : f32 to vector<16x128xf32>
    %66 = arith.select %64, %61, %65 : vector<16x128xi1>, vector<16x128xf32>
    %cst_50 = arith.constant dense<0.000000e+00> : vector<16xf32>
    %67 = vector.multi_reduction <add>, %66, %cst_50 [1] : vector<16x128xf32> to vector<16xf32>
    %68 = vector.shape_cast %67 : vector<16xf32> to vector<16x1xf32>
    %cst_51 = arith.constant dense<0.000000e+00> : vector<16xf32>
    %69 = vector.multi_reduction <add>, %61, %cst_51 [1] : vector<16x128xf32> to vector<16xf32>
    %70 = vector.shape_cast %69 : vector<16xf32> to vector<16x1xf32>
    %71 = arith.subf %70, %68 : vector<16x1xf32>
    %c0_52 = arith.constant 0 : index
    %c0_53 = arith.constant 0 : index
    %72 = vector.load %arg3[%c0_52, %c0_53] : memref<16x1xf32, #tpu.memory_space<vmem>>, vector<16x1xf32>
    %cst_54 = arith.constant 0.000000e+00 : f32
    %73 = vector.broadcast %cst_54 : f32 to vector<16x1xf32>
    %74 = arith.maximumf %71, %73 : vector<16x1xf32>
    %75 = math.absf %71 : vector<16x1xf32>
    %cst_55 = arith.constant 0.000000e+00 : f32
    %76 = vector.broadcast %cst_55 : f32 to vector<16x1xf32>
    %77 = arith.subf %76, %75 : vector<16x1xf32>
    %78 = math.exp %77 : vector<16x1xf32>
    %cst_56 = arith.constant 1.000000e+00 : f32
    %79 = vector.broadcast %cst_56 : f32 to vector<16x1xf32>
    %80 = arith.addf %79, %78 : vector<16x1xf32>
    %81 = math.log %80 : vector<16x1xf32>
    %82 = arith.addf %74, %81 : vector<16x1xf32>
    %cst_57 = arith.constant 0.899999976 : f32
    %83 = vector.broadcast %cst_57 : f32 to vector<16x1xf32>
    %84 = arith.mulf %83, %82 : vector<16x1xf32>
    %cst_58 = arith.constant 1.000000e-01 : f32
    %85 = vector.broadcast %cst_58 : f32 to vector<16x1xf32>
    %86 = arith.addf %85, %84 : vector<16x1xf32>
    %87 = arith.mulf %86, %86 : vector<16x1xf32>
    %cst_59 = arith.constant 0.303963542 : f32
    %88 = vector.broadcast %cst_59 : f32 to vector<16x1xf32>
    %89 = arith.mulf %88, %87 : vector<16x1xf32>
    %cst_60 = arith.constant 1.000000e+00 : f32
    %90 = vector.broadcast %cst_60 : f32 to vector<16x1xf32>
    %91 = arith.addf %90, %89 : vector<16x1xf32>
    %92 = math.rsqrt %91 : vector<16x1xf32>
    %93 = arith.mulf %68, %92 : vector<16x1xf32>
    %cst_61 = arith.constant 0.000000e+00 : f32
    %94 = vector.broadcast %cst_61 : f32 to vector<16x1xf32>
    %95 = arith.subf %94, %93 : vector<16x1xf32>
    %96 = math.exp %95 : vector<16x1xf32>
    %cst_62 = arith.constant 1.000000e+00 : f32
    %97 = vector.broadcast %cst_62 : f32 to vector<16x1xf32>
    %98 = arith.addf %97, %96 : vector<16x1xf32>
    %cst_63 = arith.constant 1.000000e+00 : f32
    %99 = vector.broadcast %cst_63 : f32 to vector<16x1xf32>
    %100 = arith.divf %99, %98 : vector<16x1xf32>
    %cst_64 = arith.constant 1.000000e+00 : f32
    %101 = vector.broadcast %cst_64 : f32 to vector<16x1xf32>
    %102 = arith.subf %101, %100 : vector<16x1xf32>
    %103 = arith.mulf %100, %102 : vector<16x1xf32>
    %cst_65 = arith.constant 1.000000e+00 : f32
    %104 = vector.broadcast %cst_65 : f32 to vector<16x1xf32>
    %105 = arith.subf %104, %92 : vector<16x1xf32>
    %106 = arith.mulf %103, %105 : vector<16x1xf32>
    %cst_66 = arith.constant 0.000000e+00 : f32
    %107 = vector.broadcast %cst_66 : f32 to vector<16x1xf32>
    %108 = arith.maximumf %106, %107 : vector<16x1xf32>
    %109 = math.absf %106 : vector<16x1xf32>
    %cst_67 = arith.constant 0.000000e+00 : f32
    %110 = vector.broadcast %cst_67 : f32 to vector<16x1xf32>
    %111 = arith.subf %110, %109 : vector<16x1xf32>
    %112 = math.exp %111 : vector<16x1xf32>
    %cst_68 = arith.constant 1.000000e+00 : f32
    %113 = vector.broadcast %cst_68 : f32 to vector<16x1xf32>
    %114 = arith.addf %113, %112 : vector<16x1xf32>
    %115 = math.log %114 : vector<16x1xf32>
    %116 = arith.addf %108, %115 : vector<16x1xf32>
    %cst_69 = arith.constant 9.99999997E-7 : f32
    %117 = vector.broadcast %cst_69 : f32 to vector<16x1xf32>
    %118 = arith.addf %116, %117 : vector<16x1xf32>
    %119 = arith.subf %72, %100 : vector<16x1xf32>
    %120 = arith.divf %119, %118 : vector<16x1xf32>
    %121 = arith.mulf %120, %120 : vector<16x1xf32>
    %cst_70 = arith.constant -5.000000e-01 : f32
    %122 = vector.broadcast %cst_70 : f32 to vector<16x1xf32>
    %123 = arith.mulf %122, %121 : vector<16x1xf32>
    %124 = math.log %118 : vector<16x1xf32>
    %125 = arith.subf %123, %124 : vector<16x1xf32>
    %cst_71 = arith.constant 0.918938517 : f32
    %126 = vector.broadcast %cst_71 : f32 to vector<16x1xf32>
    %127 = arith.subf %125, %126 : vector<16x1xf32>
    %c0_i32_72 = arith.constant 0 : i32
    %128 = vector.broadcast %c0_i32_72 : i32 to vector<16x128xi32>
    %129 = arith.cmpi eq, %62, %128 : vector<16x128xi32>
    %cst_73 = arith.constant 0.000000e+00 : f32
    %130 = vector.shape_cast %100 : vector<16x1xf32> to vector<16x1xf32>
    %131 = vector.broadcast %130 : vector<16x1xf32> to vector<16x128xf32>
    %132 = vector.broadcast %cst_73 : f32 to vector<16x128xf32>
    %133 = arith.select %129, %131, %132 : vector<16x128xi1>, vector<16x128xf32>
    %c1_i32 = arith.constant 1 : i32
    %134 = vector.broadcast %c1_i32 : i32 to vector<16x128xi32>
    %135 = arith.cmpi eq, %62, %134 : vector<16x128xi32>
    %cst_74 = arith.constant 0.000000e+00 : f32
    %136 = vector.shape_cast %118 : vector<16x1xf32> to vector<16x1xf32>
    %137 = vector.broadcast %136 : vector<16x1xf32> to vector<16x128xf32>
    %138 = vector.broadcast %cst_74 : f32 to vector<16x128xf32>
    %139 = arith.select %135, %137, %138 : vector<16x128xi1>, vector<16x128xf32>
    %140 = arith.addf %133, %139 : vector<16x128xf32>
    %c2_i32 = arith.constant 2 : i32
    %141 = vector.broadcast %c2_i32 : i32 to vector<16x128xi32>
    %142 = arith.cmpi eq, %62, %141 : vector<16x128xi32>
    %cst_75 = arith.constant 0.000000e+00 : f32
    %143 = vector.shape_cast %127 : vector<16x1xf32> to vector<16x1xf32>
    %144 = vector.broadcast %143 : vector<16x1xf32> to vector<16x128xf32>
    %145 = vector.broadcast %cst_75 : f32 to vector<16x128xf32>
    %146 = arith.select %142, %144, %145 : vector<16x128xi1>, vector<16x128xf32>
    %147 = arith.addf %140, %146 : vector<16x128xf32>
    %c0_76 = arith.constant 0 : index
    %c0_77 = arith.constant 0 : index
    %148 = vector.load %arg9[%c0_76, %c0_77] : memref<16x128xf32, #tpu.memory_space<vmem>>, vector<16x128xf32>
    tpu.vector_store %arg9[%c0_76, %c0_77], %147 {strides = array<i32>} : memref<16x128xf32, #tpu.memory_space<vmem>>, vector<16x128xf32>,
    return
  }
  func.func @transform_0(%arg0: i32) -> (i32, i32) {
    %c0_i32 = arith.constant 0 : i32
    %c0_i32_0 = arith.constant 0 : i32
    return %arg0, %c0_i32 : i32, i32
  }
  func.func @transform_1(%arg0: i32) -> (i32, i32) {
    %c0_i32 = arith.constant 0 : i32
    %c0_i32_0 = arith.constant 0 : i32
    return %arg0, %c0_i32 : i32, i32
  }
  func.func @transform_2(%arg0: i32) -> (i32, i32) {
    %c0_i32 = arith.constant 0 : i32
    %c0_i32_0 = arith.constant 0 : i32
    return %arg0, %c0_i32 : i32, i32
  }
  func.func @transform_3(%arg0: i32) -> (i32, i32) {
    %c0_i32 = arith.constant 0 : i32
    %c0_i32_0 = arith.constant 0 : i32
    %c0_i32_1 = arith.constant 0 : i32
    return %c0_i32, %c0_i32_0 : i32, i32
  }
  func.func @transform_4(%arg0: i32) -> (i32, i32, i32) {
    %c0_i32 = arith.constant 0 : i32
    %c0_i32_0 = arith.constant 0 : i32
    %c0_i32_1 = arith.constant 0 : i32
    %c0_i32_2 = arith.constant 0 : i32
    return %c0_i32, %c0_i32_0, %c0_i32_1 : i32, i32, i32
  }
  func.func @transform_5(%arg0: i32) -> (i32, i32, i32) {
    %c0_i32 = arith.constant 0 : i32
    %c0_i32_0 = arith.constant 0 : i32
    %c0_i32_1 = arith.constant 0 : i32
    %c0_i32_2 = arith.constant 0 : i32
    return %c0_i32, %c0_i32_0, %c0_i32_1 : i32, i32, i32
  }
  func.func @transform_6(%arg0: i32) -> (i32, i32, i32) {
    %c0_i32 = arith.constant 0 : i32
    %c0_i32_0 = arith.constant 0 : i32
    %c0_i32_1 = arith.constant 0 : i32
    %c0_i32_2 = arith.constant 0 : i32
    return %c0_i32, %c0_i32_0, %c0_i32_1 : i32, i32, i32
  }
  func.func @transform_7(%arg0: i32) -> (i32, i32, i32) {
    %c0_i32 = arith.constant 0 : i32
    %c0_i32_0 = arith.constant 0 : i32
    %c0_i32_1 = arith.constant 0 : i32
    %c0_i32_2 = arith.constant 0 : i32
    return %c0_i32, %c0_i32_0, %c0_i32_1 : i32, i32, i32
  }
  func.func @transform_8(%arg0: i32) -> (i32, i32) {
    %c0_i32 = arith.constant 0 : i32
    %c0_i32_0 = arith.constant 0 : i32
    return %arg0, %c0_i32 : i32, i32
  }
}

</mosaic_0001>

<llo_original>
// kernel: tpu_custom_call.1
$region0: #{tpu_custom_call.1}
  #allocation0 [shape = 'u32[]', space=smem, size = 0x4, offset = 0x4, fixed_abs, tag = 'smem constant byte address 0x4 - core index']
  #allocation1 [shape = 'u32[144,128]{1,0:T(1,128)}', space=vmem, size = 0x12000, scoped, tag = 'internal scratch']
  %s0 = inlined_call_operand.vmem [shape: bf16[32,128], index: 0, kind: input, shape index: {}]
  %s1 = inlined_call_operand.vmem [shape: bf16[32,128], index: 1, kind: input, shape index: {}]
  %s2 = inlined_call_operand.vmem [shape: f32[32,1], index: 2, kind: input, shape index: {}]
  %s3 = inlined_call_operand.vmem [shape: bf16[16,16], index: 3, kind: input, shape index: {}]
  %s4 = inlined_call_operand.hbm [shape: bf16[3,128,128], index: 4, kind: input, shape index: {}]
  %s5 = inlined_call_operand.vmem [shape: f32[3,1,128], index: 5, kind: input, shape index: {}]
  %s6 = inlined_call_operand.hbm [shape: bf16[3,128,128], index: 6, kind: input, shape index: {}]
  %s7 = inlined_call_operand.vmem [shape: f32[3,1,128], index: 7, kind: input, shape index: {}]
  %s8 = inlined_call_operand.hbm [shape: f32[32,128], index: 8, kind: output, shape index: {}]
  %s9 = sld [smem:[#allocation0]]
  $region73: #{tpu_custom_call.1} parent=0
    _
  %s11 = ssub.s32 1, %s9
  %s12 = scalar_select 0, %s11, %s9
  $region1: #{tpu_custom_call.1} parent=0
    #allocation2 [shape = 'u8[98304]{0}', space=vmem, size = 0x18000, scoped, tag = 'input window, operand 4, single buffered']
    #allocation3 [shape = 's32[2]{0}', space=sflag, size = 0x8, scoped, tag = 'scoped memory for tpu_custom_call.1']
    #allocation4 [shape = 's32[2]{0}', space=sflag, size = 0x8, scoped, tag = 'scoped memory for tpu_custom_call.1']
    #allocation5 [shape = 'u8[98304]{0}', space=vmem, size = 0x18000, scoped, tag = 'input window, operand 6, single buffered']
    #allocation6 [shape = 's32[1]{0}', space=sflag, size = 0x4, scoped, tag = 'scoped memory for tpu_custom_call.1']
    #allocation7 [shape = 'u8[16384]{0}', space=vmem, size = 0x4000, scoped, tag = 'output window, operand 0']
    %13 = vsyncpa [#allocation3], 0
    %14 = vsyncpa [#allocation6], 0
    %15 = vsyncpa [#allocation4], 0
    %s16 = scalar_lea.sflag [#allocation4], 1
    %17 = vsyncpa %s16, 0
    loop: start=0, step=1, limit=4
    $region2: #{tpu_custom_call.1} parent=1 // loop_pre_header
      _
    $region3: #{tpu_custom_call.1} parent=1 // loop_header
      %s19 = sphi 0, %s23
      %p20 = scmp.ge.s32.totalorder %s19, 4
      %s29 = sphi 0, %s31
      %s32 = sphi 0, %s29
      %s33 = sphi 0, %s32
      %s49 = sphi 0, %s33
      %s55 = sphi 0, %s57
      %s58 = sphi 0, %s55
      %s59 = sphi 0, %s58
      %s75 = sphi 0, %s59
      %s81 = sphi 0, %s83
      %s84 = sphi 0, %s81
      %s85 = sphi 0, %s84
      %s101 = sphi 0, %s85
      %s105 = sphi 0, %s105
      %s107 = sphi 0, %s105
      %s108 = sphi 0, %s107
      %s122 = sphi 0, %s108
      %s126 = sphi 0, %s126
      %s128 = sphi 0, %s126
      %s129 = sphi 0, %s128
      %s143 = sphi 0, %s129
      %s147 = sphi 0, %s147
      %s149 = sphi 0, %s147
      %s150 = sphi 0, %s149
      %s164 = sphi 0, %s150
      %s168 = sphi 0, %s168
      %s170 = sphi 0, %s168
      %s171 = sphi 0, %s170
      %s185 = sphi 0, %s171
      %s189 = sphi 0, %s189
      %s191 = sphi 0, %s189
      %s192 = sphi 0, %s191
      %s206 = sphi 0, %s192
      %s212 = sphi 0, %s214
      %s215 = sphi 0, %s212
      %s216 = sphi 0, %s215
      %s232 = sphi 0, %s216
    $region4: #{tpu_custom_call.1} parent=1 // loop_header_branch
      %22 = sbr.rel (%p20) target = $region8
    $region5: #{tpu_custom_call.1} parent=1 // loop_body
      %s24 = ssub.s32 %s19, 1
      %s25 = ssub.s32 %s19, 2
      %s26 = sadd.s32 %s19, 1
      %s27 = ssub.s32 %s19, %s26
      %p28 = scmp.eq.s32.totalorder %s27, 0
      %s30 = sadd.s32 %s29, 1
      %s31 = scalar_select %p28, %s29, %s30
      %p34 = pneg %p28
      %p35 = scmp.eq.s32.totalorder %s19, 1
      %p36 = por %p34, %p35
      %p37 = scmp.ne.s32.totalorder %s29, %s32
      %p38 = scmp.eq.s32.totalorder %s19, 0
      %p39 = por %p37, %p38
      %p40 = scmp.ne.s32.totalorder %s29, %s32
      %p41 = scmp.eq.s32.totalorder %s24, 1
      %p42 = por %p40, %p41
      %p43 = scmp.ne.s32.totalorder %s32, %s33
      %p44 = scmp.eq.s32.totalorder %s24, 0
      %p45 = por %p43, %p44
      %p46 = scmp.ne.s32.totalorder %s32, %s33
      %p47 = scmp.eq.s32.totalorder %s25, 1
      %p48 = por %p46, %p47
      %p50 = scmp.ne.s32.totalorder %s33, %s49
      %p51 = scmp.eq.s32.totalorder %s25, 0
      %p52 = por %p50, %p51
      %s53 = ssub.s32 %s19, %s26
      %p54 = scmp.eq.s32.totalorder %s53, 0
      %s56 = sadd.s32 %s55, 1
      %s57 = scalar_select %p54, %s55, %s56
      %p60 = pneg %p54
      %p61 = scmp.eq.s32.totalorder %s19, 1
      %p62 = por %p60, %p61
      %p63 = scmp.ne.s32.totalorder %s55, %s58
      %p64 = scmp.eq.s32.totalorder %s19, 0
      %p65 = por %p63, %p64
      %p66 = scmp.ne.s32.totalorder %s55, %s58
      %p67 = scmp.eq.s32.totalorder %s24, 1
      %p68 = por %p66, %p67
      %p69 = scmp.ne.s32.totalorder %s58, %s59
      %p70 = scmp.eq.s32.totalorder %s24, 0
      %p71 = por %p69, %p70
      %p72 = scmp.ne.s32.totalorder %s58, %s59
      %p73 = scmp.eq.s32.totalorder %s25, 1
      %p74 = por %p72, %p73
      %p76 = scmp.ne.s32.totalorder %s59, %s75
      %p77 = scmp.eq.s32.totalorder %s25, 0
      %p78 = por %p76, %p77
      %s79 = ssub.s32 %s19, %s26
      %p80 = scmp.eq.s32.totalorder %s79, 0
      %s82 = sadd.s32 %s81, 1
      %s83 = scalar_select %p80, %s81, %s82
      %p86 = pneg %p80
      %p87 = scmp.eq.s32.totalorder %s19, 1
      %p88 = por %p86, %p87
      %p89 = scmp.ne.s32.totalorder %s81, %s84
      %p90 = scmp.eq.s32.totalorder %s19, 0
      %p91 = por %p89, %p90
      %p92 = scmp.ne.s32.totalorder %s81, %s84
      %p93 = scmp.eq.s32.totalorder %s24, 1
      %p94 = por %p92, %p93
      %p95 = scmp.ne.s32.totalorder %s84, %s85
      %p96 = scmp.eq.s32.totalorder %s24, 0
      %p97 = por %p95, %p96
      %p98 = scmp.ne.s32.totalorder %s84, %s85
      %p99 = scmp.eq.s32.totalorder %s25, 1
      %p100 = por %p98, %p99
      %p102 = scmp.ne.s32.totalorder %s85, %s101
      %p103 = scmp.eq.s32.totalorder %s25, 0
      %p104 = por %p102, %p103
      %s106 = sadd.s32 %s105, 1
      %p109 = scmp.eq.s32.totalorder %s19, 1
      %p110 = scmp.ne.s32.totalorder %s105, %s107
      %p111 = scmp.eq.s32.totalorder %s19, 0
      %p112 = por %p110, %p111
      %p113 = scmp.ne.s32.totalorder %s105, %s107
      %p114 = scmp.eq.s32.totalorder %s24, 1
      %p115 = por %p113, %p114
      %p116 = scmp.ne.s32.totalorder %s107, %s108
      %p117 = scmp.eq.s32.totalorder %s24, 0
      %p118 = por %p116, %p117
      %p119 = scmp.ne.s32.totalorder %s107, %s108
      %p120 = scmp.eq.s32.totalorder %s25, 1
      %p121 = por %p119, %p120
      %p123 = scmp.ne.s32.totalorder %s108, %s122
      %p124 = scmp.eq.s32.totalorder %s25, 0
      %p125 = por %p123, %p124
      %s127 = sadd.s32 %s126, 1
      %p130 = scmp.eq.s32.totalorder %s19, 1
      %p131 = scmp.ne.s32.totalorder %s126, %s128
      %p132 = scmp.eq.s32.totalorder %s19, 0
      %p133 = por %p131, %p132
      %p134 = scmp.ne.s32.totalorder %s126, %s128
      %p135 = scmp.eq.s32.totalorder %s24, 1
      %p136 = por %p134, %p135
      %p137 = scmp.ne.s32.totalorder %s128, %s129
      %p138 = scmp.eq.s32.totalorder %s24, 0
      %p139 = por %p137, %p138
      %p140 = scmp.ne.s32.totalorder %s128, %s129
      %p141 = scmp.eq.s32.totalorder %s25, 1
      %p142 = por %p140, %p141
      %p144 = scmp.ne.s32.totalorder %s129, %s143
      %p145 = scmp.eq.s32.totalorder %s25, 0
      %p146 = por %p144, %p145
      %s148 = sadd.s32 %s147, 1
      %p151 = scmp.eq.s32.totalorder %s19, 1
      %p152 = scmp.ne.s32.totalorder %s147, %s149
      %p153 = scmp.eq.s32.totalorder %s19, 0
      %p154 = por %p152, %p153
      %p155 = scmp.ne.s32.totalorder %s147, %s149
      %p156 = scmp.eq.s32.totalorder %s24, 1
      %p157 = por %p155, %p156
      %p158 = scmp.ne.s32.totalorder %s149, %s150
      %p159 = scmp.eq.s32.totalorder %s24, 0
      %p160 = por %p158, %p159
      %p161 = scmp.ne.s32.totalorder %s149, %s150
      %p162 = scmp.eq.s32.totalorder %s25, 1
      %p163 = por %p161, %p162
      %p165 = scmp.ne.s32.totalorder %s150, %s164
      %p166 = scmp.eq.s32.totalorder %s25, 0
      %p167 = por %p165, %p166
      %s169 = sadd.s32 %s168, 1
      %p172 = scmp.eq.s32.totalorder %s19, 1
      %p173 = scmp.ne.s32.totalorder %s168, %s170
      %p174 = scmp.eq.s32.totalorder %s19, 0
      %p175 = por %p173, %p174
      %p176 = scmp.ne.s32.totalorder %s168, %s170
      %p177 = scmp.eq.s32.totalorder %s24, 1
      %p178 = por %p176, %p177
      %p179 = scmp.ne.s32.totalorder %s170, %s171
      %p180 = scmp.eq.s32.totalorder %s24, 0
      %p181 = por %p179, %p180
      %p182 = scmp.ne.s32.totalorder %s170, %s171
      %p183 = scmp.eq.s32.totalorder %s25, 1
      %p184 = por %p182, %p183
      %p186 = scmp.ne.s32.totalorder %s171, %s185
      %p187 = scmp.eq.s32.totalorder %s25, 0
      %p188 = por %p186, %p187
      %s190 = sadd.s32 %s189, 1
      %p193 = scmp.eq.s32.totalorder %s19, 1
      %p194 = scmp.ne.s32.totalorder %s189, %s191
      %p195 = scmp.eq.s32.totalorder %s19, 0
      %p196 = por %p194, %p195
      %p197 = scmp.ne.s32.totalorder %s189, %s191
      %p198 = scmp.eq.s32.totalorder %s24, 1
      %p199 = por %p197, %p198
      %p200 = scmp.ne.s32.totalorder %s191, %s192
      %p201 = scmp.eq.s32.totalorder %s24, 0
      %p202 = por %p200, %p201
      %p203 = scmp.ne.s32.totalorder %s191, %s192
      %p204 = scmp.eq.s32.totalorder %s25, 1
      %p205 = por %p203, %p204
      %p207 = scmp.ne.s32.totalorder %s192, %s206
      %p208 = scmp.eq.s32.totalorder %s25, 0
      %p209 = por %p207, %p208
      %s210 = ssub.s32 %s19, %s26
      %p211 = scmp.eq.s32.totalorder %s210, 0
      %s213 = sadd.s32 %s212, 1
      %s214 = scalar_select %p211, %s212, %s213
      %p217 = pneg %p211
      %p218 = scmp.eq.s32.totalorder %s19, 1
      %p219 = por %p217, %p218
      %p220 = scmp.ne.s32.totalorder %s212, %s215
      %p221 = scmp.eq.s32.totalorder %s19, 0
      %p222 = por %p220, %p221
      %p223 = scmp.ne.s32.totalorder %s212, %s215
      %p224 = scmp.eq.s32.totalorder %s24, 1
      %p225 = por %p223, %p224
      %p226 = scmp.ne.s32.totalorder %s215, %s216
      %p227 = scmp.eq.s32.totalorder %s24, 0
      %p228 = por %p226, %p227
      %p229 = scmp.ne.s32.totalorder %s215, %s216
      %p230 = scmp.eq.s32.totalorder %s25, 1
      %p231 = por %p229, %p230
      %p233 = scmp.ne.s32.totalorder %s216, %s232
      %p234 = scmp.eq.s32.totalorder %s25, 0
      %p235 = por %p233, %p234
      %p236 = scmp.le.s32.totalorder 1, %s19
      %p237 = scmp.lt.s32.totalorder %s19, 3
      %p238 = pnand %p236, %p237
      %p239 = pneg %p238
      // Predicated region
      $region9: #{tpu_custom_call.1} parent=5 // pred_check
        _
      $region10: #{tpu_custom_call.1} parent=5 // pred_check_branch
        %241 = sbr.rel (%p238) target = $region12
      $region11: #{tpu_custom_call.1} parent=5 // pred_region
        %s242 = ssub.s32 %s19, 1
        // Predicated region
        $region13: #{tpu_custom_call.1} parent=11 // pred_check
          %p243 = pneg %p118
        $region14: #{tpu_custom_call.1} parent=11 // pred_check_branch
          %245 = sbr.rel (%p243) target = $region16
        $region15: #{tpu_custom_call.1} parent=11 // pred_region
          _
        $region16: #{tpu_custom_call.1} parent=11 // pred_fallthru
          _
        // Predicated region
        $region17: #{tpu_custom_call.1} parent=11 // pred_check
          %p246 = pneg %p139
        $region18: #{tpu_custom_call.1} parent=11 // pred_check_branch
          %248 = sbr.rel (%p246) target = $region20
        $region19: #{tpu_custom_call.1} parent=11 // pred_region
          %s250 = ssub.s32 3072, 3072
          %251 = vsyncadd [#allocation3], %s250
          %s252 = sshll.u32 [#allocation2], 4
          %s253 = int_to_ptr.vmem [resolvable:$true] %s252
          %258 = dma.hbm_to_vmem [thread:$0]  %s4, 3072, %s253, [#allocation3], 64, 64, 4
        $region20: #{tpu_custom_call.1} parent=11 // pred_fallthru
          _
        // Predicated region
        $region21: #{tpu_custom_call.1} parent=11 // pred_check
          %p259 = pneg %p160
        $region22: #{tpu_custom_call.1} parent=11 // pred_check_branch
          %261 = sbr.rel (%p259) target = $region24
        $region23: #{tpu_custom_call.1} parent=11 // pred_region
          _
        $region24: #{tpu_custom_call.1} parent=11 // pred_fallthru
          _
        // Predicated region
        $region25: #{tpu_custom_call.1} parent=11 // pred_check
          %p262 = pneg %p181
        $region26: #{tpu_custom_call.1} parent=11 // pred_check_branch
          %264 = sbr.rel (%p262) target = $region28
        $region27: #{tpu_custom_call.1} parent=11 // pred_region
          %s266 = ssub.s32 3072, 3072
          %267 = vsyncadd [#allocation6], %s266
          %s268 = sshll.u32 [#allocation5], 4
          %s269 = int_to_ptr.vmem [resolvable:$true] %s268
          %274 = dma.hbm_to_vmem [thread:$0]  %s6, 3072, %s269, [#allocation6], 64, 64, 4
        $region28: #{tpu_custom_call.1} parent=11 // pred_fallthru
          _
        // Predicated region
        $region29: #{tpu_custom_call.1} parent=11 // pred_check
          %p275 = pneg %p202
        $region30: #{tpu_custom_call.1} parent=11 // pred_check_branch
          %277 = sbr.rel (%p275) target = $region32
        $region31: #{tpu_custom_call.1} parent=11 // pred_region
          _
        $region32: #{tpu_custom_call.1} parent=11 // pred_fallthru
          _
      $region12: #{tpu_custom_call.1} parent=5 // pred_fallthru
        _
      %p278 = scmp.lt.s32.totalorder %s19, 2
      // Predicated region
      $region33: #{tpu_custom_call.1} parent=5 // pred_check
        %p279 = pneg %p278
      $region34: #{tpu_custom_call.1} parent=5 // pred_check_branch
        %281 = sbr.rel (%p279) target = $region36
      $region35: #{tpu_custom_call.1} parent=5 // pred_region
        // Predicated region
        $region37: #{tpu_custom_call.1} parent=35 // pred_check
          %p282 = pneg %p39
        $region38: #{tpu_custom_call.1} parent=35 // pred_check_branch
          %284 = sbr.rel (%p282) target = $region40
        $region39: #{tpu_custom_call.1} parent=35 // pred_region
          %s285 = smul.u32 2, %s19
          %p286 = scmp.lt.s32.totalorder %s285, 3
          %s287 = scalar_select %p286, %s285, 3
          %s288 = smul.addr %s287, 4
          %s289 = scalar_lea.vmem %s0, %s288
          %s290 = smul.u32 2, %s19
        $region40: #{tpu_custom_call.1} parent=35 // pred_fallthru
          _
        // Predicated region
        $region41: #{tpu_custom_call.1} parent=35 // pred_check
          %p291 = pneg %p65
        $region42: #{tpu_custom_call.1} parent=35 // pred_check_branch
          %293 = sbr.rel (%p291) target = $region44
        $region43: #{tpu_custom_call.1} parent=35 // pred_region
          %s294 = smul.u32 2, %s19
          %p295 = scmp.lt.s32.totalorder %s294, 3
          %s296 = scalar_select %p295, %s294, 3
          %s297 = smul.addr %s296, 4
          %s298 = scalar_lea.vmem %s1, %s297
          %s299 = smul.u32 2, %s19
        $region44: #{tpu_custom_call.1} parent=35 // pred_fallthru
          _
        // Predicated region
        $region45: #{tpu_custom_call.1} parent=35 // pred_check
          %p300 = pneg %p91
        $region46: #{tpu_custom_call.1} parent=35 // pred_check_branch
          %302 = sbr.rel (%p300) target = $region48
        $region47: #{tpu_custom_call.1} parent=35 // pred_region
          %s303 = smul.u32 2, %s19
          %p304 = scmp.lt.s32.totalorder %s303, 3
          %s305 = scalar_select %p304, %s303, 3
          %s306 = smul.addr %s305, 8
          %s307 = scalar_lea.vmem %s2, %s306
          %s308 = smul.u32 2, %s19
        $region48: #{tpu_custom_call.1} parent=35 // pred_fallthru
          _
      $region36: #{tpu_custom_call.1} parent=5 // pred_fallthru
        _
      %p309 = scmp.le.s32.totalorder 1, %s19
      %p310 = scmp.lt.s32.totalorder %s19, 3
      %p311 = pnand %p309, %p310
      %p312 = pneg %p311
      // Predicated region
      $region49: #{tpu_custom_call.1} parent=5 // pred_check
        _
      $region50: #{tpu_custom_call.1} parent=5 // pred_check_branch
        %314 = sbr.rel (%p311) target = $region52
      $region51: #{tpu_custom_call.1} parent=5 // pred_region
        %s315 = ssub.s32 %s19, 1
        // Predicated region
        $region53: #{tpu_custom_call.1} parent=51 // pred_check
          %p316 = pneg %p139
        $region54: #{tpu_custom_call.1} parent=51 // pred_check_branch
          %318 = sbr.rel (%p316) target = $region56
        $region55: #{tpu_custom_call.1} parent=51 // pred_region
          %319 = dma.done [#allocation3], 3072
        $region56: #{tpu_custom_call.1} parent=51 // pred_fallthru
          _
        // Predicated region
        $region57: #{tpu_custom_call.1} parent=51 // pred_check
          %p320 = pneg %p181
        $region58: #{tpu_custom_call.1} parent=51 // pred_check_branch
          %322 = sbr.rel (%p320) target = $region60
        $region59: #{tpu_custom_call.1} parent=51 // pred_region
          %323 = dma.done [#allocation6], 3072
        $region60: #{tpu_custom_call.1} parent=51 // pred_fallthru
          _
        %s324 = smul.u32 2, %s24
        %p325 = scmp.lt.s32.totalorder %s324, 3
        %s326 = scalar_select %p325, %s324, 3
        %s327 = smul.addr %s326, 4
        %s328 = scalar_lea.vmem %s0, %s327
        %p329 = pneg %p45
        %p330 = pneg %p42
        %s331 = smul.u32 2, %s24
        %p332 = scmp.lt.s32.totalorder %s331, 3
        %s333 = scalar_select %p332, %s331, 3
        %s334 = smul.addr %s333, 4
        %s335 = scalar_lea.vmem %s1, %s334
        %p336 = pneg %p71
        %p337 = pneg %p68
        %s338 = smul.u32 2, %s24
        %p339 = scmp.lt.s32.totalorder %s338, 3
        %s340 = scalar_select %p339, %s338, 3
        %s341 = smul.addr %s340, 8
        %s342 = scalar_lea.vmem %s2, %s341
        %p343 = pneg %p97
        %p344 = pneg %p94
        %p345 = pneg %p118
        %p346 = pneg %p115
        %p347 = pneg %p139
        %p348 = pneg %p136
        %p349 = pneg %p160
        %p350 = pneg %p157
        %p351 = pneg %p181
        %p352 = pneg %p178
        %p353 = pneg %p202
        %p354 = pneg %p199
        %p355 = pneg %p228
        %p356 = pneg %p225
        %s357 = sand.u32 %s215, 1
        %s358 = scalar_lea.sflag [#allocation4], %s357
        %s359 = sand.u32 %s215, 1
        %s360 = smul.addr %s359, 16
        %s361 = scalar_lea.vmem [#allocation7], %s360
        %s362 = smul.u32 2, %s24
        %p363 = scmp.lt.s32.totalorder %s362, 3
        %s364 = scalar_select %p363, %s362, 3
        %s365 = smul.addr %s364, 4
        %s366 = scalar_lea.vmem %s0, %s365
        %s367 = smul.u32 2, %s24
        %s368 = smul.u32 2, %s24
        %p369 = scmp.lt.s32.totalorder %s368, 3
        %s370 = scalar_select %p369, %s368, 3
        %s371 = smul.addr %s370, 4
        %s372 = scalar_lea.vmem %s1, %s371
        %s373 = smul.u32 2, %s24
        %s374 = smul.u32 2, %s24
        %p375 = scmp.lt.s32.totalorder %s374, 3
        %s376 = scalar_select %p375, %s374, 3
        %s377 = smul.addr %s376, 8
        %s378 = scalar_lea.vmem %s2, %s377
        %s379 = smul.u32 2, %s24
        %s380 = smul.u32 2, %s24
        %v382 = vld [vmem:[%s366] sm:$0xf]
        %v383 = vld [vmem:[%s366 + $0x4] sm:$0xf]
        %v384 = vld [vmem:[#allocation2] sm:$0xf]
        %v385 = vld [vmem:[#allocation2 + $0x4] sm:$0xf]
        %v386 = vld [vmem:[#allocation2 + $0x8] sm:$0xf]
        %v387 = vld [vmem:[#allocation2 + $0xc] sm:$0xf]
        %v388 = vld [vmem:[#allocation2 + $0x10] sm:$0xf]
        %v389 = vld [vmem:[#allocation2 + $0x14] sm:$0xf]
        %v390 = vld [vmem:[#allocation2 + $0x18] sm:$0xf]
        %v391 = vld [vmem:[#allocation2 + $0x1c] sm:$0xf]
        %v392 = vld [vmem:[#allocation2 + $0x20] sm:$0xf]
        %v393 = vld [vmem:[#allocation2 + $0x24] sm:$0xf]
        %v394 = vld [vmem:[#allocation2 + $0x28] sm:$0xf]
        %v395 = vld [vmem:[#allocation2 + $0x2c] sm:$0xf]
        %v396 = vld [vmem:[#allocation2 + $0x30] sm:$0xf]
        %v397 = vld [vmem:[#allocation2 + $0x34] sm:$0xf]
        %v398 = vld [vmem:[#allocation2 + $0x38] sm:$0xf]
        %v399 = vld [vmem:[#allocation2 + $0x3c] sm:$0xf]
        %v400 = vld [vmem:[%s5] sm:$0x1]
        %v402 = vlaneseq
        %v403 = vshrl.u32 %v402, 7
        %v404 = vsub.s32 0, %v403
        %v405 = vrot.slane %v400, %v404
        %v409 = vunpack.c.l.b16 %v382
        %v410 = vunpack.c.l.b16 %v383
        %v411 = vpack.c.b16 %v410, %v409
        %v429 = vunpack.c.l.b16 %v384
        %v430 = vunpack.c.l.b16 %v385
        %v431 = vunpack.c.l.b16 %v386
        %v432 = vunpack.c.l.b16 %v387
        %v433 = vunpack.c.l.b16 %v388
        %v434 = vunpack.c.l.b16 %v389
        %v435 = vunpack.c.l.b16 %v390
        %v436 = vunpack.c.l.b16 %v391
        %v437 = vunpack.c.l.b16 %v392
        %v438 = vunpack.c.l.b16 %v393
        %v439 = vunpack.c.l.b16 %v394
        %v440 = vunpack.c.l.b16 %v395
        %v441 = vunpack.c.l.b16 %v396
        %v442 = vunpack.c.l.b16 %v397
        %v443 = vunpack.c.l.b16 %v398
        %v444 = vunpack.c.l.b16 %v399
        %v445 = vpack.c.b16 %v430, %v429
        %v446 = vpack.c.b16 %v432, %v431
        %v447 = vpack.c.b16 %v434, %v433
        %v448 = vpack.c.b16 %v436, %v435
        %v449 = vpack.c.b16 %v438, %v437
        %v450 = vpack.c.b16 %v440, %v439
        %v451 = vpack.c.b16 %v442, %v441
        %v452 = vpack.c.b16 %v444, %v443
        %461 = vmatprep.subr.bf16.mxu0 0
        %462 = vmatpush1.bf16.msra.mxu0 %v445
        %463 = vmatprep.subr.bf16.mxu0 0
        %464 = vmatpush1.bf16.msra.mxu0 %v446
        %465 = vmatprep.subr.bf16.mxu0 0
        %466 = vmatpush1.bf16.msra.mxu0 %v447
        %467 = vmatprep.subr.bf16.mxu0 0
        %468 = vmatpush1.bf16.msra.mxu0 %v448
        %469 = vmatprep.subr.bf16.mxu0 0
        %470 = vmatpush1.bf16.msra.mxu0 %v449
        %471 = vmatprep.subr.bf16.mxu0 0
        %472 = vmatpush1.bf16.msra.mxu0 %v450
        %473 = vmatprep.subr.bf16.mxu0 0
        %474 = vmatpush1.bf16.msra.mxu0 %v451
        %475 = vmatprep.subr.bf16.mxu0 0
        %476 = vmatpush1.bf16.msra.mxu0 %v452
        %477 = vmatprep.subr.bf16.mxu0 0
        %478 = vmatpush1.bf16.msra.mxu0 0
        %479 = vmatprep.subr.bf16.mxu0 0
        %480 = vmatpush1.bf16.msra.mxu0 0
        %481 = vmatprep.subr.bf16.mxu0 0
        %482 = vmatpush1.bf16.msra.mxu0 0
        %483 = vmatprep.subr.bf16.mxu0 0
        %484 = vmatpush1.bf16.msra.mxu0 0
        %485 = vmatprep.subr.bf16.mxu0 0
        %486 = vmatpush1.bf16.msra.mxu0 0
        %487 = vmatprep.subr.bf16.mxu0 0
        %488 = vmatpush1.bf16.msra.mxu0 0
        %489 = vmatprep.subr.bf16.mxu0 0
        %490 = vmatpush1.bf16.msra.mxu0 0
        %491 = vmatprep.subr.bf16.mxu0 0
        %492 = vmatpush1.bf16.msra.mxu0 0
        %493 = vmatprep.mubr.bf16.mxu0 0
        %494 = vmatmul.mubr.bf16.gmra.mrb[0].mxu0 %v411
        %v495 = vpop.f32.mrb[0].mxu0
        %v496 = vadd.f32 %v405, %v495
        %v497 = vpop.f32.mrb[0].mxu0
        %v498 = vpop.f32.mrb[0].mxu0
        %v499 = vadd.f32 %v405, %v498
        %v500 = vpop.f32.mrb[0].mxu0
        %501 = vdwg.mxu0
        %v502 = vmax.f32 %v496, 0.0
        %v503 = vmax.f32 %v499, 0.0
        %v504 = vpack.c.bf16 %v503, %v502
        %s505 = scalar_lea.vmem [#allocation2], 64
        %v506 = vld [vmem:[%s505] sm:$0xf]
        %v507 = vld [vmem:[%s505 + $0x4] sm:$0xf]
        %v508 = vld [vmem:[%s505 + $0x8] sm:$0xf]
        %v509 = vld [vmem:[%s505 + $0xc] sm:$0xf]
        %v510 = vld [vmem:[%s505 + $0x10] sm:$0xf]
        %v511 = vld [vmem:[%s505 + $0x14] sm:$0xf]
        %v512 = vld [vmem:[%s505 + $0x18] sm:$0xf]
        %v513 = vld [vmem:[%s505 + $0x1c] sm:$0xf]
        %v514 = vld [vmem:[%s505 + $0x20] sm:$0xf]
        %v515 = vld [vmem:[%s505 + $0x24] sm:$0xf]
        %v516 = vld [vmem:[%s505 + $0x28] sm:$0xf]
        %v517 = vld [vmem:[%s505 + $0x2c] sm:$0xf]
        %v518 = vld [vmem:[%s505 + $0x30] sm:$0xf]
        %v519 = vld [vmem:[%s505 + $0x34] sm:$0xf]
        %v520 = vld [vmem:[%s505 + $0x38] sm:$0xf]
        %v521 = vld [vmem:[%s505 + $0x3c] sm:$0xf]
        %s522 = scalar_lea.vmem %s5, 1
        %v523 = vld [vmem:[%s522] sm:$0x1]
        %v525 = vlaneseq
        %v526 = vshrl.u32 %v525, 7
        %v527 = vsub.s32 0, %v526
        %v528 = vrot.slane %v523, %v527
        %v546 = vunpack.c.l.b16 %v506
        %v547 = vunpack.c.l.b16 %v507
        %v548 = vunpack.c.l.b16 %v508
        %v549 = vunpack.c.l.b16 %v509
        %v550 = vunpack.c.l.b16 %v510
        %v551 = vunpack.c.l.b16 %v511
        %v552 = vunpack.c.l.b16 %v512
        %v553 = vunpack.c.l.b16 %v513
        %v554 = vunpack.c.l.b16 %v514
        %v555 = vunpack.c.l.b16 %v515
        %v556 = vunpack.c.l.b16 %v516
        %v557 = vunpack.c.l.b16 %v517
        %v558 = vunpack.c.l.b16 %v518
        %v559 = vunpack.c.l.b16 %v519
        %v560 = vunpack.c.l.b16 %v520
        %v561 = vunpack.c.l.b16 %v521
        %v562 = vpack.c.b16 %v547, %v546
        %v563 = vpack.c.b16 %v549, %v548
        %v564 = vpack.c.b16 %v551, %v550
        %v565 = vpack.c.b16 %v553, %v552
        %v566 = vpack.c.b16 %v555, %v554
        %v567 = vpack.c.b16 %v557, %v556
        %v568 = vpack.c.b16 %v559, %v558
        %v569 = vpack.c.b16 %v561, %v560
        %578 = vmatprep.subr.bf16.mxu0 0
        %579 = vmatpush1.bf16.msra.mxu0 %v562
        %580 = vmatprep.subr.bf16.mxu0 0
        %581 = vmatpush1.bf16.msra.mxu0 %v563
        %582 = vmatprep.subr.bf16.mxu0 0
        %583 = vmatpush1.bf16.msra.mxu0 %v564
        %584 = vmatprep.subr.bf16.mxu0 0
        %585 = vmatpush1.bf16.msra.mxu0 %v565
        %586 = vmatprep.subr.bf16.mxu0 0
        %587 = vmatpush1.bf16.msra.mxu0 %v566
        %588 = vmatprep.subr.bf16.mxu0 0
        %589 = vmatpush1.bf16.msra.mxu0 %v567
        %590 = vmatprep.subr.bf16.mxu0 0
        %591 = vmatpush1.bf16.msra.mxu0 %v568
        %592 = vmatprep.subr.bf16.mxu0 0
        %593 = vmatpush1.bf16.msra.mxu0 %v569
        %594 = vmatprep.subr.bf16.mxu0 0
        %595 = vmatpush1.bf16.msra.mxu0 0
        %596 = vmatprep.subr.bf16.mxu0 0
        %597 = vmatpush1.bf16.msra.mxu0 0
        %598 = vmatprep.subr.bf16.mxu0 0
        %599 = vmatpush1.bf16.msra.mxu0 0
        %600 = vmatprep.subr.bf16.mxu0 0
        %601 = vmatpush1.bf16.msra.mxu0 0
        %602 = vmatprep.subr.bf16.mxu0 0
        %603 = vmatpush1.bf16.msra.mxu0 0
        %604 = vmatprep.subr.bf16.mxu0 0
        %605 = vmatpush1.bf16.msra.mxu0 0
        %606 = vmatprep.subr.bf16.mxu0 0
        %607 = vmatpush1.bf16.msra.mxu0 0
        %608 = vmatprep.subr.bf16.mxu0 0
        %609 = vmatpush1.bf16.msra.mxu0 0
        %610 = vmatprep.mubr.bf16.mxu0 0
        %611 = vmatmul.mubr.bf16.gmra.mrb[0].mxu0 %v504
        %v612 = vpop.f32.mrb[0].mxu0
        %v613 = vadd.f32 %v528, %v612
        %v614 = vpop.f32.mrb[0].mxu0
        %v615 = vpop.f32.mrb[0].mxu0
        %v616 = vadd.f32 %v528, %v615
        %v617 = vpop.f32.mrb[0].mxu0
        %618 = vdwg.mxu0
        %v619 = vmax.f32 %v613, 0.0
        %v620 = vmax.f32 %v616, 0.0
        %v621 = vpack.c.bf16 %v620, %v619
        %s622 = scalar_lea.vmem [#allocation2], 128
        %v623 = vld [vmem:[%s622] sm:$0xf]
        %v624 = vld [vmem:[%s622 + $0x4] sm:$0xf]
        %v625 = vld [vmem:[%s622 + $0x8] sm:$0xf]
        %v626 = vld [vmem:[%s622 + $0xc] sm:$0xf]
        %v627 = vld [vmem:[%s622 + $0x10] sm:$0xf]
        %v628 = vld [vmem:[%s622 + $0x14] sm:$0xf]
        %v629 = vld [vmem:[%s622 + $0x18] sm:$0xf]
        %v630 = vld [vmem:[%s622 + $0x1c] sm:$0xf]
        %v631 = vld [vmem:[%s622 + $0x20] sm:$0xf]
        %v632 = vld [vmem:[%s622 + $0x24] sm:$0xf]
        %v633 = vld [vmem:[%s622 + $0x28] sm:$0xf]
        %v634 = vld [vmem:[%s622 + $0x2c] sm:$0xf]
        %v635 = vld [vmem:[%s622 + $0x30] sm:$0xf]
        %v636 = vld [vmem:[%s622 + $0x34] sm:$0xf]
        %v637 = vld [vmem:[%s622 + $0x38] sm:$0xf]
        %v638 = vld [vmem:[%s622 + $0x3c] sm:$0xf]
        %s639 = scalar_lea.vmem %s5, 2
        %v640 = vld [vmem:[%s639] sm:$0x1]
        %v642 = vlaneseq
        %v643 = vshrl.u32 %v642, 7
        %v644 = vsub.s32 0, %v643
        %v645 = vrot.slane %v640, %v644
        %v663 = vunpack.c.l.b16 %v623
        %v664 = vunpack.c.l.b16 %v624
        %v665 = vunpack.c.l.b16 %v625
        %v666 = vunpack.c.l.b16 %v626
        %v667 = vunpack.c.l.b16 %v627
        %v668 = vunpack.c.l.b16 %v628
        %v669 = vunpack.c.l.b16 %v629
        %v670 = vunpack.c.l.b16 %v630
        %v671 = vunpack.c.l.b16 %v631
        %v672 = vunpack.c.l.b16 %v632
        %v673 = vunpack.c.l.b16 %v633
        %v674 = vunpack.c.l.b16 %v634
        %v675 = vunpack.c.l.b16 %v635
        %v676 = vunpack.c.l.b16 %v636
        %v677 = vunpack.c.l.b16 %v637
        %v678 = vunpack.c.l.b16 %v638
        %v679 = vpack.c.b16 %v664, %v663
        %v680 = vpack.c.b16 %v666, %v665
        %v681 = vpack.c.b16 %v668, %v667
        %v682 = vpack.c.b16 %v670, %v669
        %v683 = vpack.c.b16 %v672, %v671
        %v684 = vpack.c.b16 %v674, %v673
        %v685 = vpack.c.b16 %v676, %v675
        %v686 = vpack.c.b16 %v678, %v677
        %695 = vmatprep.subr.bf16.mxu0 0
        %696 = vmatpush1.bf16.msra.mxu0 %v679
        %697 = vmatprep.subr.bf16.mxu0 0
        %698 = vmatpush1.bf16.msra.mxu0 %v680
        %699 = vmatprep.subr.bf16.mxu0 0
        %700 = vmatpush1.bf16.msra.mxu0 %v681
        %701 = vmatprep.subr.bf16.mxu0 0
        %702 = vmatpush1.bf16.msra.mxu0 %v682
        %703 = vmatprep.subr.bf16.mxu0 0
        %704 = vmatpush1.bf16.msra.mxu0 %v683
        %705 = vmatprep.subr.bf16.mxu0 0
        %706 = vmatpush1.bf16.msra.mxu0 %v684
        %707 = vmatprep.subr.bf16.mxu0 0
        %708 = vmatpush1.bf16.msra.mxu0 %v685
        %709 = vmatprep.subr.bf16.mxu0 0
        %710 = vmatpush1.bf16.msra.mxu0 %v686
        %711 = vmatprep.subr.bf16.mxu0 0
        %712 = vmatpush1.bf16.msra.mxu0 0
        %713 = vmatprep.subr.bf16.mxu0 0
        %714 = vmatpush1.bf16.msra.mxu0 0
        %715 = vmatprep.subr.bf16.mxu0 0
        %716 = vmatpush1.bf16.msra.mxu0 0
        %717 = vmatprep.subr.bf16.mxu0 0
        %718 = vmatpush1.bf16.msra.mxu0 0
        %719 = vmatprep.subr.bf16.mxu0 0
        %720 = vmatpush1.bf16.msra.mxu0 0
        %721 = vmatprep.subr.bf16.mxu0 0
        %722 = vmatpush1.bf16.msra.mxu0 0
        %723 = vmatprep.subr.bf16.mxu0 0
        %724 = vmatpush1.bf16.msra.mxu0 0
        %725 = vmatprep.subr.bf16.mxu0 0
        %726 = vmatpush1.bf16.msra.mxu0 0
        %727 = vmatprep.mubr.bf16.mxu0 0
        %728 = vmatmul.mubr.bf16.gmra.mrb[0].mxu0 %v621
        %v729 = vpop.f32.mrb[0].mxu0
        %v730 = vadd.f32 %v645, %v729
        %v731 = vpop.f32.mrb[0].mxu0
        %v732 = vpop.f32.mrb[0].mxu0
        %v733 = vadd.f32 %v645, %v732
        %v734 = vpop.f32.mrb[0].mxu0
        %735 = vdwg.mxu0
        %v736 = vld [vmem:[%s3] sm:$0xf]
        %v737 = vld [vmem:[%s3 + $0x4] sm:$0xf]
        %v738 = vpack.c.bf16 %v733, %v730
        %v739 = vld [vmem:[%s372] sm:$0xf]
        %v740 = vld [vmem:[%s372 + $0x4] sm:$0xf]
        %v741 = vunpack.c.l.bf16 %v739
        %v742 = vunpack.c.l.bf16 %v740
        %v745 = vunpack.c.l.b16 %v736
        %v746 = vunpack.c.l.b16 %v737
        %v747 = vpack.c.b16 %v746, %v745
        %vm748 = vcmask 130048
        %v750 = vsel %vm748, %v747, 0
        %752 = vmatprep.subr.bf16.mxu0 0
        %753 = vmatpush1.bf16.msra.mxu0 %v738
        %754 = vmatprep.subr.bf16.mxu0 0
        %755 = vmatpush1.bf16.msra.mxu0 0
        %756 = vmatprep.subr.bf16.mxu0 0
        %757 = vmatpush1.bf16.msra.mxu0 0
        %758 = vmatprep.subr.bf16.mxu0 0
        %759 = vmatpush1.bf16.msra.mxu0 0
        %760 = vmatprep.subr.bf16.mxu0 0
        %761 = vmatpush1.bf16.msra.mxu0 0
        %762 = vmatprep.subr.bf16.mxu0 0
        %763 = vmatpush1.bf16.msra.mxu0 0
        %764 = vmatprep.subr.bf16.mxu0 0
        %765 = vmatpush1.bf16.msra.mxu0 0
        %766 = vmatprep.subr.bf16.mxu0 0
        %767 = vmatpush1.bf16.msra.mxu0 0
        %768 = vmatprep.subr.bf16.mxu0 0
        %769 = vmatpush1.bf16.msra.mxu0 0
        %770 = vmatprep.subr.bf16.mxu0 0
        %771 = vmatpush1.bf16.msra.mxu0 0
        %772 = vmatprep.subr.bf16.mxu0 0
        %773 = vmatpush1.bf16.msra.mxu0 0
        %774 = vmatprep.subr.bf16.mxu0 0
        %775 = vmatpush1.bf16.msra.mxu0 0
        %776 = vmatprep.subr.bf16.mxu0 0
        %777 = vmatpush1.bf16.msra.mxu0 0
        %778 = vmatprep.subr.bf16.mxu0 0
        %779 = vmatpush1.bf16.msra.mxu0 0
        %780 = vmatprep.subr.bf16.mxu0 0
        %781 = vmatpush1.bf16.msra.mxu0 0
        %782 = vmatprep.subr.bf16.mxu0 0
        %783 = vmatpush1.bf16.msra.mxu0 0
        %784 = vmatprep.mubr.bf16.mxu0 0
        %785 = vmatmul.mubr.bf16.gmra.mrb[0].mxu0 %v750
        %v786 = vpop.f32.mrb[0].mxu0
        %v787 = vadd.f32 %v741, %v786
        %v788 = vpop.f32.mrb[0].mxu0
        %v789 = vpop.f32.mrb[0].mxu0
        %v790 = vadd.f32 %v742, %v789
        %v791 = vpop.f32.mrb[0].mxu0
        %792 = vdwg.mxu0
        %v793 = vpack.c.bf16 %v790, %v787
        %v794 = vld [vmem:[#allocation5] sm:$0xf]
        %v795 = vld [vmem:[#allocation5 + $0x4] sm:$0xf]
        %v796 = vld [vmem:[#allocation5 + $0x8] sm:$0xf]
        %v797 = vld [vmem:[#allocation5 + $0xc] sm:$0xf]
        %v798 = vld [vmem:[#allocation5 + $0x10] sm:$0xf]
        %v799 = vld [vmem:[#allocation5 + $0x14] sm:$0xf]
        %v800 = vld [vmem:[#allocation5 + $0x18] sm:$0xf]
        %v801 = vld [vmem:[#allocation5 + $0x1c] sm:$0xf]
        %v802 = vld [vmem:[#allocation5 + $0x20] sm:$0xf]
        %v803 = vld [vmem:[#allocation5 + $0x24] sm:$0xf]
        %v804 = vld [vmem:[#allocation5 + $0x28] sm:$0xf]
        %v805 = vld [vmem:[#allocation5 + $0x2c] sm:$0xf]
        %v806 = vld [vmem:[#allocation5 + $0x30] sm:$0xf]
        %v807 = vld [vmem:[#allocation5 + $0x34] sm:$0xf]
        %v808 = vld [vmem:[#allocation5 + $0x38] sm:$0xf]
        %v809 = vld [vmem:[#allocation5 + $0x3c] sm:$0xf]
        %v810 = vld [vmem:[%s7] sm:$0x1]
        %v812 = vlaneseq
        %v813 = vshrl.u32 %v812, 7
        %v814 = vsub.s32 0, %v813
        %v815 = vrot.slane %v810, %v814
        %v833 = vunpack.c.l.b16 %v794
        %v834 = vunpack.c.l.b16 %v795
        %v835 = vunpack.c.l.b16 %v796
        %v836 = vunpack.c.l.b16 %v797
        %v837 = vunpack.c.l.b16 %v798
        %v838 = vunpack.c.l.b16 %v799
        %v839 = vunpack.c.l.b16 %v800
        %v840 = vunpack.c.l.b16 %v801
        %v841 = vunpack.c.l.b16 %v802
        %v842 = vunpack.c.l.b16 %v803
        %v843 = vunpack.c.l.b16 %v804
        %v844 = vunpack.c.l.b16 %v805
        %v845 = vunpack.c.l.b16 %v806
        %v846 = vunpack.c.l.b16 %v807
        %v847 = vunpack.c.l.b16 %v808
        %v848 = vunpack.c.l.b16 %v809
        %v849 = vpack.c.b16 %v834, %v833
        %v850 = vpack.c.b16 %v836, %v835
        %v851 = vpack.c.b16 %v838, %v837
        %v852 = vpack.c.b16 %v840, %v839
        %v853 = vpack.c.b16 %v842, %v841
        %v854 = vpack.c.b16 %v844, %v843
        %v855 = vpack.c.b16 %v846, %v845
        %v856 = vpack.c.b16 %v848, %v847
        %865 = vmatprep.subr.bf16.mxu0 0
        %866 = vmatpush1.bf16.msra.mxu0 %v849
        %867 = vmatprep.subr.bf16.mxu0 0
        %868 = vmatpush1.bf16.msra.mxu0 %v850
        %869 = vmatprep.subr.bf16.mxu0 0
        %870 = vmatpush1.bf16.msra.mxu0 %v851
        %871 = vmatprep.subr.bf16.mxu0 0
        %872 = vmatpush1.bf16.msra.mxu0 %v852
        %873 = vmatprep.subr.bf16.mxu0 0
        %874 = vmatpush1.bf16.msra.mxu0 %v853
        %875 = vmatprep.subr.bf16.mxu0 0
        %876 = vmatpush1.bf16.msra.mxu0 %v854
        %877 = vmatprep.subr.bf16.mxu0 0
        %878 = vmatpush1.bf16.msra.mxu0 %v855
        %879 = vmatprep.subr.bf16.mxu0 0
        %880 = vmatpush1.bf16.msra.mxu0 %v856
        %881 = vmatprep.subr.bf16.mxu0 0
        %882 = vmatpush1.bf16.msra.mxu0 0
        %883 = vmatprep.subr.bf16.mxu0 0
        %884 = vmatpush1.bf16.msra.mxu0 0
        %885 = vmatprep.subr.bf16.mxu0 0
        %886 = vmatpush1.bf16.msra.mxu0 0
        %887 = vmatprep.subr.bf16.mxu0 0
        %888 = vmatpush1.bf16.msra.mxu0 0
        %889 = vmatprep.subr.bf16.mxu0 0
        %890 = vmatpush1.bf16.msra.mxu0 0
        %891 = vmatprep.subr.bf16.mxu0 0
        %892 = vmatpush1.bf16.msra.mxu0 0
        %893 = vmatprep.subr.bf16.mxu0 0
        %894 = vmatpush1.bf16.msra.mxu0 0
        %895 = vmatprep.subr.bf16.mxu0 0
        %896 = vmatpush1.bf16.msra.mxu0 0
        %897 = vmatprep.mubr.bf16.mxu0 0
        %898 = vmatmul.mubr.bf16.gmra.mrb[0].mxu0 %v793
        %v899 = vpop.f32.mrb[0].mxu0
        %v900 = vadd.f32 %v815, %v899
        %v901 = vpop.f32.mrb[0].mxu0
        %v902 = vpop.f32.mrb[0].mxu0
        %v903 = vadd.f32 %v815, %v902
        %v904 = vpop.f32.mrb[0].mxu0
        %905 = vdwg.mxu0
        %v906 = vmax.f32 %v900, 0.0
        %v907 = vmax.f32 %v903, 0.0
        %v908 = vpack.c.bf16 %v907, %v906
        %s909 = scalar_lea.vmem [#allocation5], 64
        %v910 = vld [vmem:[%s909] sm:$0xf]
        %v911 = vld [vmem:[%s909 + $0x4] sm:$0xf]
        %v912 = vld [vmem:[%s909 + $0x8] sm:$0xf]
        %v913 = vld [vmem:[%s909 + $0xc] sm:$0xf]
        %v914 = vld [vmem:[%s909 + $0x10] sm:$0xf]
        %v915 = vld [vmem:[%s909 + $0x14] sm:$0xf]
        %v916 = vld [vmem:[%s909 + $0x18] sm:$0xf]
        %v917 = vld [vmem:[%s909 + $0x1c] sm:$0xf]
        %v918 = vld [vmem:[%s909 + $0x20] sm:$0xf]
        %v919 = vld [vmem:[%s909 + $0x24] sm:$0xf]
        %v920 = vld [vmem:[%s909 + $0x28] sm:$0xf]
        %v921 = vld [vmem:[%s909 + $0x2c] sm:$0xf]
        %v922 = vld [vmem:[%s909 + $0x30] sm:$0xf]
        %v923 = vld [vmem:[%s909 + $0x34] sm:$0xf]
        %v924 = vld [vmem:[%s909 + $0x38] sm:$0xf]
        %v925 = vld [vmem:[%s909 + $0x3c] sm:$0xf]
        %s926 = scalar_lea.vmem %s7, 1
        %v927 = vld [vmem:[%s926] sm:$0x1]
        %v929 = vlaneseq
        %v930 = vshrl.u32 %v929, 7
        %v931 = vsub.s32 0, %v930
        %v932 = vrot.slane %v927, %v931
        %v950 = vunpack.c.l.b16 %v910
        %v951 = vunpack.c.l.b16 %v911
        %v952 = vunpack.c.l.b16 %v912
        %v953 = vunpack.c.l.b16 %v913
        %v954 = vunpack.c.l.b16 %v914
        %v955 = vunpack.c.l.b16 %v915
        %v956 = vunpack.c.l.b16 %v916
        %v957 = vunpack.c.l.b16 %v917
        %v958 = vunpack.c.l.b16 %v918
        %v959 = vunpack.c.l.b16 %v919
        %v960 = vunpack.c.l.b16 %v920
        %v961 = vunpack.c.l.b16 %v921
        %v962 = vunpack.c.l.b16 %v922
        %v963 = vunpack.c.l.b16 %v923
        %v964 = vunpack.c.l.b16 %v924
        %v965 = vunpack.c.l.b16 %v925
        %v966 = vpack.c.b16 %v951, %v950
        %v967 = vpack.c.b16 %v953, %v952
        %v968 = vpack.c.b16 %v955, %v954
        %v969 = vpack.c.b16 %v957, %v956
        %v970 = vpack.c.b16 %v959, %v958
        %v971 = vpack.c.b16 %v961, %v960
        %v972 = vpack.c.b16 %v963, %v962
        %v973 = vpack.c.b16 %v965, %v964
        %982 = vmatprep.subr.bf16.mxu0 0
        %983 = vmatpush1.bf16.msra.mxu0 %v966
        %984 = vmatprep.subr.bf16.mxu0 0
        %985 = vmatpush1.bf16.msra.mxu0 %v967
        %986 = vmatprep.subr.bf16.mxu0 0
        %987 = vmatpush1.bf16.msra.mxu0 %v968
        %988 = vmatprep.subr.bf16.mxu0 0
        %989 = vmatpush1.bf16.msra.mxu0 %v969
        %990 = vmatprep.subr.bf16.mxu0 0
        %991 = vmatpush1.bf16.msra.mxu0 %v970
        %992 = vmatprep.subr.bf16.mxu0 0
        %993 = vmatpush1.bf16.msra.mxu0 %v971
        %994 = vmatprep.subr.bf16.mxu0 0
        %995 = vmatpush1.bf16.msra.mxu0 %v972
        %996 = vmatprep.subr.bf16.mxu0 0
        %997 = vmatpush1.bf16.msra.mxu0 %v973
        %998 = vmatprep.subr.bf16.mxu0 0
        %999 = vmatpush1.bf16.msra.mxu0 0
        %1000 = vmatprep.subr.bf16.mxu0 0
        %1001 = vmatpush1.bf16.msra.mxu0 0
        %1002 = vmatprep.subr.bf16.mxu0 0
        %1003 = vmatpush1.bf16.msra.mxu0 0
        %1004 = vmatprep.subr.bf16.mxu0 0
        %1005 = vmatpush1.bf16.msra.mxu0 0
        %1006 = vmatprep.subr.bf16.mxu0 0
        %1007 = vmatpush1.bf16.msra.mxu0 0
        %1008 = vmatprep.subr.bf16.mxu0 0
        %1009 = vmatpush1.bf16.msra.mxu0 0
        %1010 = vmatprep.subr.bf16.mxu0 0
        %1011 = vmatpush1.bf16.msra.mxu0 0
        %1012 = vmatprep.subr.bf16.mxu0 0
        %1013 = vmatpush1.bf16.msra.mxu0 0
        %1014 = vmatprep.mubr.bf16.mxu0 0
        %1015 = vmatmul.mubr.bf16.gmra.mrb[0].mxu0 %v908
        %v1016 = vpop.f32.mrb[0].mxu0
        %v1017 = vadd.f32 %v932, %v1016
        %v1018 = vpop.f32.mrb[0].mxu0
        %v1019 = vpop.f32.mrb[0].mxu0
        %v1020 = vadd.f32 %v932, %v1019
        %v1021 = vpop.f32.mrb[0].mxu0
        %1022 = vdwg.mxu0
        %v1023 = vmax.f32 %v1017, 0.0
        %v1024 = vmax.f32 %v1020, 0.0
        %v1025 = vpack.c.bf16 %v1024, %v1023
        %s1026 = scalar_lea.vmem [#allocation5], 128
        %v1027 = vld [vmem:[%s1026] sm:$0xf]
        %v1028 = vld [vmem:[%s1026 + $0x4] sm:$0xf]
        %v1029 = vld [vmem:[%s1026 + $0x8] sm:$0xf]
        %v1030 = vld [vmem:[%s1026 + $0xc] sm:$0xf]
        %v1031 = vld [vmem:[%s1026 + $0x10] sm:$0xf]
        %v1032 = vld [vmem:[%s1026 + $0x14] sm:$0xf]
        %v1033 = vld [vmem:[%s1026 + $0x18] sm:$0xf]
        %v1034 = vld [vmem:[%s1026 + $0x1c] sm:$0xf]
        %v1035 = vld [vmem:[%s1026 + $0x20] sm:$0xf]
        %v1036 = vld [vmem:[%s1026 + $0x24] sm:$0xf]
        %v1037 = vld [vmem:[%s1026 + $0x28] sm:$0xf]
        %v1038 = vld [vmem:[%s1026 + $0x2c] sm:$0xf]
        %v1039 = vld [vmem:[%s1026 + $0x30] sm:$0xf]
        %v1040 = vld [vmem:[%s1026 + $0x34] sm:$0xf]
        %v1041 = vld [vmem:[%s1026 + $0x38] sm:$0xf]
        %v1042 = vld [vmem:[%s1026 + $0x3c] sm:$0xf]
        %s1043 = scalar_lea.vmem %s7, 2
        %v1044 = vld [vmem:[%s1043] sm:$0x1]
        %v1046 = vlaneseq
        %v1047 = vshrl.u32 %v1046, 7
        %v1048 = vsub.s32 0, %v1047
        %v1049 = vrot.slane %v1044, %v1048
        %v1067 = vunpack.c.l.b16 %v1027
        %v1068 = vunpack.c.l.b16 %v1028
        %v1069 = vunpack.c.l.b16 %v1029
        %v1070 = vunpack.c.l.b16 %v1030
        %v1071 = vunpack.c.l.b16 %v1031
        %v1072 = vunpack.c.l.b16 %v1032
        %v1073 = vunpack.c.l.b16 %v1033
        %v1074 = vunpack.c.l.b16 %v1034
        %v1075 = vunpack.c.l.b16 %v1035
        %v1076 = vunpack.c.l.b16 %v1036
        %v1077 = vunpack.c.l.b16 %v1037
        %v1078 = vunpack.c.l.b16 %v1038
        %v1079 = vunpack.c.l.b16 %v1039
        %v1080 = vunpack.c.l.b16 %v1040
        %v1081 = vunpack.c.l.b16 %v1041
        %v1082 = vunpack.c.l.b16 %v1042
        %v1083 = vpack.c.b16 %v1068, %v1067
        %v1084 = vpack.c.b16 %v1070, %v1069
        %v1085 = vpack.c.b16 %v1072, %v1071
        %v1086 = vpack.c.b16 %v1074, %v1073
        %v1087 = vpack.c.b16 %v1076, %v1075
        %v1088 = vpack.c.b16 %v1078, %v1077
        %v1089 = vpack.c.b16 %v1080, %v1079
        %v1090 = vpack.c.b16 %v1082, %v1081
        %1099 = vmatprep.subr.bf16.mxu0 0
        %1100 = vmatpush1.bf16.msra.mxu0 %v1083
        %1101 = vmatprep.subr.bf16.mxu0 0
        %1102 = vmatpush1.bf16.msra.mxu0 %v1084
        %1103 = vmatprep.subr.bf16.mxu0 0
        %1104 = vmatpush1.bf16.msra.mxu0 %v1085
        %1105 = vmatprep.subr.bf16.mxu0 0
        %1106 = vmatpush1.bf16.msra.mxu0 %v1086
        %1107 = vmatprep.subr.bf16.mxu0 0
        %1108 = vmatpush1.bf16.msra.mxu0 %v1087
        %1109 = vmatprep.subr.bf16.mxu0 0
        %1110 = vmatpush1.bf16.msra.mxu0 %v1088
        %1111 = vmatprep.subr.bf16.mxu0 0
        %1112 = vmatpush1.bf16.msra.mxu0 %v1089
        %1113 = vmatprep.subr.bf16.mxu0 0
        %1114 = vmatpush1.bf16.msra.mxu0 %v1090
        %1115 = vmatprep.subr.bf16.mxu0 0
        %1116 = vmatpush1.bf16.msra.mxu0 0
        %1117 = vmatprep.subr.bf16.mxu0 0
        %1118 = vmatpush1.bf16.msra.mxu0 0
        %1119 = vmatprep.subr.bf16.mxu0 0
        %1120 = vmatpush1.bf16.msra.mxu0 0
        %1121 = vmatprep.subr.bf16.mxu0 0
        %1122 = vmatpush1.bf16.msra.mxu0 0
        %1123 = vmatprep.subr.bf16.mxu0 0
        %1124 = vmatpush1.bf16.msra.mxu0 0
        %1125 = vmatprep.subr.bf16.mxu0 0
        %1126 = vmatpush1.bf16.msra.mxu0 0
        %1127 = vmatprep.subr.bf16.mxu0 0
        %1128 = vmatpush1.bf16.msra.mxu0 0
        %1129 = vmatprep.subr.bf16.mxu0 0
        %1130 = vmatpush1.bf16.msra.mxu0 0
        %1131 = vmatprep.mubr.bf16.mxu0 0
        %1132 = vmatmul.mubr.bf16.gmra.mrb[0].mxu0 %v1025
        %v1133 = vpop.f32.mrb[0].mxu0
        %v1134 = vadd.f32 %v1049, %v1133
        %v1135 = vpop.f32.mrb[0].mxu0
        %v1136 = vpop.f32.mrb[0].mxu0
        %v1137 = vadd.f32 %v1049, %v1136
        %v1138 = vpop.f32.mrb[0].mxu0
        %1139 = vdwg.mxu0
        %v1140 = vlaneseq
        %v1141 = vand.u32 %v1140, 127
        %vm1142 = vcmp.eq.s32.totalorder %v1141, 0
        %v1143 = vsel %vm1142, %v1134, 0.0
        %v1144 = vsel %vm1142, %v1137, 0.0
        %1145 = vadd.xlane.f32.xlu0 %v1143
        %v1146 = vpop.xlane.xlu0 %1145
        %1147 = vadd.xlane.f32.xlu0 %v1144
        %v1148 = vpop.xlane.xlu0 %1147
        %1149 = vadd.xlane.f32.xlu0 %v1134
        %v1150 = vpop.xlane.xlu0 %1149
        %1151 = vadd.xlane.f32.xlu0 %v1137
        %v1152 = vpop.xlane.xlu0 %1151
        %v1153 = vsub.f32 %v1150, %v1146
        %v1154 = vsub.f32 %v1152, %v1148
        %v1155 = vld [vmem:[%s378] sm:$0xff]
        %v1156 = vld [vmem:[%s378 + $0x8] sm:$0xff]
        %v1157 = vmax.f32 %v1153, 0.0
        %v1158 = vmax.f32 %v1154, 0.0
        %v1159 = vand.u32 2147483647, %v1153
        %v1160 = vand.u32 2147483647, %v1154
        %v1161 = vsub.f32 0.0, %v1159
        %v1162 = vsub.f32 0.0, %v1160
        %v1163 = vmul.f32 %v1161, 1.442695
        %v1164 = vpow.pop %v1163
        %v1165 = vmul.f32 %v1162, 1.442695
        %v1166 = vpow.pop %v1165
        %v1167 = vadd.f32 %v1164, 1.0
        %v1168 = vadd.f32 %v1166, 1.0
        %v1169 = vlog2.pop %v1167
        %v1170 = vmul.f32 %v1169, 0.6931472
        %v1171 = vlog2.pop %v1168
        %v1172 = vmul.f32 %v1171, 0.6931472
        %v1173 = vadd.f32 %v1157, %v1170
        %v1174 = vadd.f32 %v1158, %v1172
        %v1175 = vmul.f32 %v1173, 0.9
        %v1176 = vmul.f32 %v1174, 0.9
        %v1177 = vadd.f32 %v1175, 0.1
        %v1178 = vadd.f32 %v1176, 0.1
        %v1179 = vmul.f32 %v1177, %v1177
        %v1180 = vmul.f32 %v1178, %v1178
        %v1181 = vmul.f32 %v1179, 0.30396354
        %v1182 = vmul.f32 %v1180, 0.30396354
        %v1183 = vadd.f32 %v1181, 1.0
        %v1184 = vadd.f32 %v1182, 1.0
        %v1185 = vrsqrt.pop %v1183
        %v1186 = vrsqrt.pop %v1184
        %v1187 = vmul.f32 %v1146, %v1185
        %v1188 = vmul.f32 %v1148, %v1186
        %v1189 = vsub.f32 0.0, %v1187
        %v1190 = vsub.f32 0.0, %v1188
        %v1191 = vmul.f32 %v1189, 1.442695
        %v1192 = vpow.pop %v1191
        %v1193 = vmul.f32 %v1190, 1.442695
        %v1194 = vpow.pop %v1193
        %v1195 = vadd.f32 %v1192, 1.0
        %v1196 = vadd.f32 %v1194, 1.0
        %v1197 = vrcp.pop %v1195
        %v1198 = vmul.f32 1.0, %v1197
        %v1199 = vrcp.pop %v1196
        %v1200 = vmul.f32 1.0, %v1199
        %v1201 = vsub.f32 1.0, %v1198
        %v1202 = vsub.f32 1.0, %v1200
        %v1203 = vmul.f32 %v1198, %v1201
        %v1204 = vmul.f32 %v1200, %v1202
        %v1205 = vsub.f32 1.0, %v1185
        %v1206 = vsub.f32 1.0, %v1186
        %v1207 = vmul.f32 %v1203, %v1205
        %v1208 = vmul.f32 %v1204, %v1206
        %v1209 = vmax.f32 %v1207, 0.0
        %v1210 = vmax.f32 %v1208, 0.0
        %v1211 = vand.u32 2147483647, %v1207
        %v1212 = vand.u32 2147483647, %v1208
        %v1213 = vsub.f32 0.0, %v1211
        %v1214 = vsub.f32 0.0, %v1212
        %v1215 = vmul.f32 %v1213, 1.442695
        %v1216 = vpow.pop %v1215
        %v1217 = vmul.f32 %v1214, 1.442695
        %v1218 = vpow.pop %v1217
        %v1219 = vadd.f32 %v1216, 1.0
        %v1220 = vadd.f32 %v1218, 1.0
        %v1221 = vlog2.pop %v1219
        %v1222 = vmul.f32 %v1221, 0.6931472
        %v1223 = vlog2.pop %v1220
        %v1224 = vmul.f32 %v1223, 0.6931472
        %v1225 = vadd.f32 %v1209, %v1222
        %v1226 = vadd.f32 %v1210, %v1224
        %v1227 = vadd.f32 %v1225, 1e-06
        %v1228 = vadd.f32 %v1226, 1e-06
        %v1229 = vsub.f32 %v1155, %v1198
        %v1230 = vsub.f32 %v1156, %v1200
        %v1231 = vrcp.pop %v1227
        %v1232 = vmul.f32 %v1229, %v1231
        %v1233 = vrcp.pop %v1228
        %v1234 = vmul.f32 %v1230, %v1233
        %v1235 = vmul.f32 %v1232, %v1232
        %v1236 = vmul.f32 %v1234, %v1234
        %v1237 = vmul.f32 %v1235, -0.5
        %v1238 = vmul.f32 %v1236, -0.5
        %v1239 = vlog2.pop %v1227
        %v1240 = vmul.f32 %v1239, 0.6931472
        %v1241 = vlog2.pop %v1228
        %v1242 = vmul.f32 %v1241, 0.6931472
        %v1243 = vsub.f32 %v1237, %v1240
        %v1244 = vsub.f32 %v1238, %v1242
        %v1245 = vsub.f32 %v1243, 0.9189385
        %v1246 = vsub.f32 %v1244, 0.9189385
        %v1247 = vsel %vm1142, %v1198, 0.0
        %v1248 = vsel %vm1142, %v1200, 0.0
        %vm1249 = vcmp.eq.s32.totalorder %v1141, 1
        %v1250 = vsel %vm1249, %v1227, 0.0
        %v1251 = vsel %vm1249, %v1228, 0.0
        %v1252 = vadd.f32 %v1247, %v1250
        %v1253 = vadd.f32 %v1248, %v1251
        %vm1254 = vcmp.eq.s32.totalorder %v1141, 2
        %1256 = vset.pattern.permute.xlu0 0
        %1257 = vperm.xlu0 %1256, %v1245
        %v1258 = vpop.permute.xlu0 %1257
        %1261 = vset.pattern.permute.xlu0 0
        %1262 = vperm.xlu0 %1261, %v1246
        %v1263 = vpop.permute.xlu0 %1262
        %v1265 = vsel %vm1254, %v1258, 0.0
        %v1266 = vsel %vm1254, %v1263, 0.0
        %v1267 = vadd.f32 %v1252, %v1265
        %v1268 = vadd.f32 %v1253, %v1266
        %1269 = vst [vmem:[%s361] sm:$0xff] %v1267
        %1270 = vst [vmem:[%s361 + $0x8] sm:$0xff] %v1268
        %s1271 = sand.u32 %s215, 1
        %s1272 = scalar_lea.sflag [#allocation4], %s1271
        %s1273 = sand.u32 %s215, 1
        %s1274 = smul.addr %s1273, 16
        %s1275 = scalar_lea.vmem [#allocation7], %s1274
        // Predicated region
        $region61: #{tpu_custom_call.1} parent=51 // pred_check
          %p1276 = pneg %p225
        $region62: #{tpu_custom_call.1} parent=51 // pred_check_branch
          %1278 = sbr.rel (%p1276) target = $region64
        $region63: #{tpu_custom_call.1} parent=51 // pred_region
          %s1279 = smul.u32 2, %s24
          %s1281 = ssub.s32 256, 256
          %1282 = vsyncadd %s1272, %s1281
          %s1283 = smul.addr %s1279, 128
          %s1284 = scalar_lea.hbm %s8, %s1283
          %s1285 = sshll.u32 %s1275, 4
          %s1286 = int_to_ptr.vmem [resolvable:$true] %s1285
          %1291 = dma.vmem_to_hbm [thread:$0]  %s1286, 256, %s1284, %s1272, 128, 128, 8
        $region64: #{tpu_custom_call.1} parent=51 // pred_fallthru
          _
      $region52: #{tpu_custom_call.1} parent=5 // pred_fallthru
        _
      %p1292 = scmp.le.s32.totalorder 2, %s19
      // Predicated region
      $region65: #{tpu_custom_call.1} parent=5 // pred_check
        %p1293 = pneg %p1292
      $region66: #{tpu_custom_call.1} parent=5 // pred_check_branch
        %1295 = sbr.rel (%p1293) target = $region68
      $region67: #{tpu_custom_call.1} parent=5 // pred_region
        %s1296 = ssub.s32 %s19, 2
        // Predicated region
        $region69: #{tpu_custom_call.1} parent=67 // pred_check
          %p1297 = pneg %p231
        $region70: #{tpu_custom_call.1} parent=67 // pred_check_branch
          %1299 = sbr.rel (%p1297) target = $region72
        $region71: #{tpu_custom_call.1} parent=67 // pred_region
          %s1300 = sand.u32 %s216, 1
          %s1301 = scalar_lea.sflag [#allocation4], %s1300
          %s1302 = sand.u32 %s216, 1
          %s1303 = smul.addr %s1302, 16
          %s1304 = scalar_lea.vmem [#allocation7], %s1303
          %1305 = dma.done %s1301, 256
        $region72: #{tpu_custom_call.1} parent=67 // pred_fallthru
          _
      $region68: #{tpu_custom_call.1} parent=5 // pred_fallthru
        _
    $region6: #{tpu_custom_call.1} parent=1 // loop_footer
      %s23 = sadd.s32 1, %s19
    $region7: #{tpu_custom_call.1} parent=1 // loop_footer_branch
      %18 = sbr.rel target = $region3
    $region8: #{tpu_custom_call.1} parent=1 // loop_exit
      _
    %1306 = vsyncpa [#allocation3], 1
    %s1307 = scalar_lea.sflag [#allocation3], 1
    %1308 = vsyncpa %s1307, 1
    %1309 = vsyncpa [#allocation6], 1
    %1310 = vsyncpa [#allocation4], 1
    %s1311 = scalar_lea.sflag [#allocation4], 1
    %1312 = vsyncpa %s1311, 1

</llo_original>
